<compile_context>
chip_gen: v6e
topology: v6e:2x2x1
jax: 0.10.0
libtpu: 0.0.40
codegen_flags: <defaults>
</compile_context>

<pallas_src>
import functools

import jax
import jax.numpy as jnp
from jax import lax
from jax.experimental import pallas as pl
from jax.experimental.pallas import tpu as pltpu


# ----------------------------- in-kernel layer -------------------------------

def _dsc_layer(x, n_rows, dw_ref, pw_ref, sh_ref, c, w):
    """depthwise 3x3 -> pointwise 1x1 (BN scale folded in) -> +shift -> ReLU.

    x:      (n_rows + 2, (w + 2) * c) f32, W-padded, one halo row each side.
    dw_ref: (3, 3, w * c)    depthwise taps, tiled over w (f32).
    pw_ref: (w * c, n_out)   block-diagonal pointwise matrix, BN scale folded
                             into its columns, bf16 (zero pad columns optional
                             so the result comes out already W-padded).
    sh_ref: (1, n_out)       folded bias + BN shift (zero in pad columns), f32.
    returns (n_rows, n_out) f32.
    """
    wc = w * c
    # 9 depthwise taps: static slices of the pre-padded slab + VPU FMAs (f32).
    acc = x[1:n_rows + 1, c:c + wc] * dw_ref[1, 1]
    for ky in range(3):
        for kx in range(3):
            if ky == 1 and kx == 1:
                continue
            acc = acc + x[ky:ky + n_rows, kx * c:kx * c + wc] * dw_ref[ky, kx]
    # pointwise conv (+ BN scale) as a bf16 block-diagonal matmul on the MXU.
    y = jnp.dot(acc.astype(jnp.bfloat16), pw_ref[...],
                preferred_element_type=jnp.float32)
    return jnp.maximum(y + sh_ref[0], 0.0)          # fused bias+BN shift, ReLU


def _double_conv_kernel(x_ref, dw1, pw1, t1, dw2, pw2, t2, o_ref,
                        *, h, w, cin, cout):
    # Whole (padded) image slab for this batch element, auto-pipelined by the
    # BlockSpec machinery (no manual DMA / no exposed latency).
    xs = x_ref[0].astype(jnp.float32)                     # (h+4, (w+2)*cin)

    # Layer 1 over image rows plus one halo row each side; h1 comes out already
    # W-padded ((w+2)*cout lanes, pad cols == 0 via pw1's zero pad columns).
    h1 = _dsc_layer(xs, h + 2, dw1, pw1, t1, cin, w)      # (h+2, (w+2)*cout)

    # Rows 0 and h+1 of h1 correspond to image rows -1 and h; layer 2 must see
    # zeros there (its conv zero-pads), so mask them (single VPU select).
    row = lax.broadcasted_iota(jnp.int32, (h + 2, 1), 0)
    h1 = jnp.where(jnp.logical_and(row >= 1, row <= h), h1, 0.0)

    # Layer 2.
    h2 = _dsc_layer(h1, h, dw2, pw2, t2, cout, w)         # (h, w*cout)
    o_ref[0] = h2.astype(o_ref.dtype)


# ------------------------------- wrapper --------------------------------------

def _fold_bn(bias, gamma, beta, mean, var, eps):
    scale = gamma / jnp.sqrt(var + eps)
    shift = (bias - mean) * scale + beta
    return scale, shift


def _pack_dw(dw, w):
    # (3, 3, c) -> (3, 3, w*c) with [ky, kx, wi*c + ci] = dw[ky, kx, ci]
    return jnp.tile(dw.astype(jnp.float32), (1, 1, w))


def _block_diag_pw(pw, w, pad_out):
    # (cin, cout) -> (w*cin, w*cout) block diagonal (bf16); optionally add cout
    # zero output columns on each side so the matmul result is already W-padded.
    cin, cout = pw.shape
    eye = jnp.eye(w, dtype=jnp.float32)
    bd = jnp.einsum("uv,io->uivo", eye, pw.astype(jnp.float32))
    bd = bd.reshape(w * cin, w * cout)
    if pad_out:
        bd = jnp.pad(bd, ((0, 0), (cout, cout)))
    return bd.astype(jnp.bfloat16)


def _tile_affine(vec, w, pad):
    t = jnp.tile(vec.astype(jnp.float32), (w,))
    if pad:
        t = jnp.pad(t, (vec.shape[0], vec.shape[0]))
    return t.reshape(1, -1)


def double_conv_forward(x_nchw, params, eps=1e-5):
    """NCHW in, NCHW out (eval-mode DoubleConv). Activations travel through HBM
    in x_nchw.dtype (f32 or bf16); depthwise math is f32, MXU matmuls are bf16
    with f32 accumulation; output is f32."""
    n, cin, h, w = x_nchw.shape
    cout = params["pw1"].shape[1]
    act_dtype = x_nchw.dtype
    assert w * max(cin, cout) <= 2048, "packed-lane layout targets small C"

    # NCHW -> lane-packed slab with the conv zero padding pre-baked:
    # pad H by 2 (two fused 3x3 layers) and W by 1, pack (W+2, Cin) into lanes.
    xp = jnp.transpose(x_nchw, (0, 2, 3, 1))
    xp = jnp.pad(xp, ((0, 0), (2, 2), (1, 1), (0, 0)))
    xp = xp.reshape(n, h + 4, (w + 2) * cin).astype(act_dtype)

    # Fold conv bias + BatchNorm: scale into the pointwise columns, shift stays.
    s1, t1 = _fold_bn(params["b1"], params["g1"], params["beta1"],
                      params["m1"], params["v1"], eps)
    s2, t2 = _fold_bn(params["b2"], params["g2"], params["beta2"],
                      params["m2"], params["v2"], eps)

    dw1 = _pack_dw(params["dw1"], w)                                  # f32
    pw1 = _block_diag_pw(params["pw1"] * s1[None, :], w, pad_out=True)   # bf16
    t1t = _tile_affine(t1, w, pad=True)                               # f32
    dw2 = _pack_dw(params["dw2"], w)
    pw2 = _block_diag_pw(params["pw2"] * s2[None, :], w, pad_out=False)
    t2t = _tile_affine(t2, w, pad=False)

    def full(shape):
        nd = len(shape)
        # Grid-invariant weight blocks (tiny; re-fetch is skipped since the
        # block index never changes across the grid).
        return pl.BlockSpec(shape, lambda i, _nd=nd: (0,) * _nd)

    kernel = functools.partial(_double_conv_kernel,
                               h=h, w=w, cin=cin, cout=cout)

    out_packed = pl.pallas_call(
        kernel,
        out_shape=jax.ShapeDtypeStruct((n, h, w * cout), jnp.float32),
        grid_spec=pltpu.PrefetchScalarGridSpec(
            num_scalar_prefetch=0,
            grid=(n,),                      # one whole image per grid step
            in_specs=[
                pl.BlockSpec((1, h + 4, (w + 2) * cin), lambda i: (i, 0, 0)),
                full(dw1.shape), full(pw1.shape), full(t1t.shape),
                full(dw2.shape), full(pw2.shape), full(t2t.shape),
            ],
            out_specs=pl.BlockSpec((1, h, w * cout), lambda i: (i, 0, 0)),
        ),
        compiler_params=pltpu.CompilerParams(
            dimension_semantics=("parallel",),
            vmem_limit_bytes=32 * 1024 * 1024),
    )(xp, dw1, pw1, t1t, dw2, pw2, t2t)

    # lane-dense slab -> NCHW (single reshape + transpose at the PyTorch boundary)
    return out_packed.reshape(n, h, w, cout).transpose(0, 3, 1, 2)


# --------------------------- params & reference ------------------------------

def init_params(key, cin, cout):
    ks = jax.random.split(key, 16)
    p = {}
    p["dw1"] = 0.4 * jax.random.normal(ks[0], (3, 3, cin), jnp.float32)
    p["pw1"] = 0.4 * jax.random.normal(ks[1], (cin, cout), jnp.float32)
    p["b1"] = 0.1 * jax.random.normal(ks[2], (cout,), jnp.float32)
    p["g1"] = 1.0 + 0.1 * jax.random.normal(ks[3], (cout,), jnp.float32)
    p["beta1"] = 0.1 * jax.random.normal(ks[4], (cout,), jnp.float32)
    p["m1"] = 0.1 * jax.random.normal(ks[5], (cout,), jnp.float32)
    p["v1"] = jax.random.uniform(ks[6], (cout,), jnp.float32, 0.5, 1.5)
    p["dw2"] = 0.4 * jax.random.normal(ks[7], (3, 3, cout), jnp.float32)
    p["pw2"] = 0.4 * jax.random.normal(ks[8], (cout, cout), jnp.float32)
    p["b2"] = 0.1 * jax.random.normal(ks[9], (cout,), jnp.float32)
    p["g2"] = 1.0 + 0.1 * jax.random.normal(ks[10], (cout,), jnp.float32)
    p["beta2"] = 0.1 * jax.random.normal(ks[11], (cout,), jnp.float32)
    p["m2"] = 0.1 * jax.random.normal(ks[12], (cout,), jnp.float32)
    p["v2"] = jax.random.uniform(ks[13], (cout,), jnp.float32, 0.5, 1.5)
    return p


def ref_double_conv(x_nchw, p, eps=1e-5):
    """Pure-JAX (XLA conv) reference in NCHW, matching PyTorch eval semantics."""
    def dsc(x, dw, pw, b):
        C = x.shape[1]
        dw_oihw = jnp.transpose(dw, (2, 0, 1))[:, None]          # (C, 1, 3, 3)
        y = lax.conv_general_dilated(
            x, dw_oihw, (1, 1), ((1, 1), (1, 1)),
            dimension_numbers=("NCHW", "OIHW", "NCHW"),
            feature_group_count=C, precision=lax.Precision.HIGHEST)
        pw_oihw = jnp.transpose(pw, (1, 0))[:, :, None, None]    # (Cout, Cin, 1, 1)
        y = lax.conv_general_dilated(
            y, pw_oihw, (1, 1), ((0, 0), (0, 0)),
            dimension_numbers=("NCHW", "OIHW", "NCHW"),
            precision=lax.Precision.HIGHEST)
        return y + b[None, :, None, None]

    def bn(x, g, beta, m, v):
        inv = (g / jnp.sqrt(v + eps))[None, :, None, None]
        return (x - m[None, :, None, None]) * inv + beta[None, :, None, None]

    y = jax.nn.relu(bn(dsc(x_nchw, p["dw1"], p["pw1"], p["b1"]),
                       p["g1"], p["beta1"], p["m1"], p["v1"]))
    y = jax.nn.relu(bn(dsc(y, p["dw2"], p["pw2"], p["b2"]),
                       p["g2"], p["beta2"], p["m2"], p["v2"]))
    return y


# --------------------------------- main ---------------------------------------

if __name__ == "__main__":
    key = jax.random.PRNGKey(0)
    kx, kp = jax.random.split(key)

    N, Cin, Cout, H, W = 2, 4, 8, 16, 16
    x = jax.random.normal(kx, (N, Cin, H, W), jnp.float32)   # NCHW, like PyTorch
    params = init_params(kp, Cin, Cout)

    fwd = jax.jit(double_conv_forward)

    out = jax.block_until_ready(fwd(x, params))
    assert out.shape == (N, Cout, H, W), out.shape
    ref = ref_double_conv(x, params)
    # bf16 MXU operands (pointwise) => slightly looser tolerance than pure f32.
    if not jnp.allclose(out, ref, atol=5e-2, rtol=5e-2):
        max_err = float(jnp.max(jnp.abs(out - ref)))
        raise AssertionError(f"kernel/reference mismatch, max abs err = {max_err}")

    print("KERNEL_OK")
</pallas_src>

<mosaic_0001>
module attributes {stable_mosaic.version = 11 : i64} {
  func.func @_double_conv_kernel(%arg0: i32, %arg1: memref<1x20x72xf32, #tpu.memory_space<vmem>>, %arg2: memref<3x3x64xf32, #tpu.memory_space<vmem>>, %arg3: memref<64x144xbf16, #tpu.memory_space<vmem>>, %arg4: memref<1x144xf32, #tpu.memory_space<vmem>>, %arg5: memref<3x3x128xf32, #tpu.memory_space<vmem>>, %arg6: memref<128x128xbf16, #tpu.memory_space<vmem>>, %arg7: memref<1x128xf32, #tpu.memory_space<vmem>>, %arg8: memref<1x16x128xf32, #tpu.memory_space<vmem>>) attributes {dimension_semantics = [#tpu.dimension_semantics<parallel>], iteration_bounds = array<i64: 2>, scalar_prefetch = 0 : i64, scratch_operands = 0 : i64, tpu.core_type = #tpu.core_type<tc>, window_params = [{transform_indices = @transform_0, window_bounds = array<i64: 1, 20, 72>}, {pipeline_mode = #tpu.pipeline_mode<synchronous>, transform_indices = @transform_1, window_bounds = array<i64: 3, 3, 64>}, {pipeline_mode = #tpu.pipeline_mode<synchronous>, transform_indices = @transform_2, window_bounds = array<i64: 64, 144>}, {pipeline_mode = #tpu.pipeline_mode<synchronous>, transform_indices = @transform_3, window_bounds = array<i64: 1, 144>}, {pipeline_mode = #tpu.pipeline_mode<synchronous>, transform_indices = @transform_4, window_bounds = array<i64: 3, 3, 128>}, {pipeline_mode = #tpu.pipeline_mode<synchronous>, transform_indices = @transform_5, window_bounds = array<i64: 128, 128>}, {pipeline_mode = #tpu.pipeline_mode<synchronous>, transform_indices = @transform_6, window_bounds = array<i64: 1, 128>}, {transform_indices = @transform_7, window_bounds = array<i64: 1, 16, 128>}]} {
    %c0 = arith.constant 0 : index
    %c0_0 = arith.constant 0 : index
    %c0_1 = arith.constant 0 : index
    %0 = vector.load %arg1[%c0, %c0_0, %c0_1] : memref<1x20x72xf32, #tpu.memory_space<vmem>>, vector<1x20x72xf32>
    %1 = vector.shape_cast %0 : vector<1x20x72xf32> to vector<20x72xf32>
    %2 = vector.extract_strided_slice %1 {offsets = [1, 4], sizes = [18, 64], strides = [1, 1]} : vector<20x72xf32> to vector<18x64xf32>
    %c1 = arith.constant 1 : index
    %c1_2 = arith.constant 1 : index
    %c0_3 = arith.constant 0 : index
    %3 = vector.load %arg2[%c1, %c1_2, %c0_3] : memref<3x3x64xf32, #tpu.memory_space<vmem>>, vector<1x1x64xf32>
    %4 = vector.shape_cast %3 : vector<1x1x64xf32> to vector<64xf32>
    %5 = vector.shape_cast %4 : vector<64xf32> to vector<1x64xf32>
    %6 = vector.broadcast %5 : vector<1x64xf32> to vector<18x64xf32>
    %7 = arith.mulf %2, %6 : vector<18x64xf32>
    %8 = vector.extract_strided_slice %1 {offsets = [0, 0], sizes = [18, 64], strides = [1, 1]} : vector<20x72xf32> to vector<18x64xf32>
    %c0_4 = arith.constant 0 : index
    %c0_5 = arith.constant 0 : index
    %c0_6 = arith.constant 0 : index
    %9 = vector.load %arg2[%c0_4, %c0_5, %c0_6] : memref<3x3x64xf32, #tpu.memory_space<vmem>>, vector<1x1x64xf32>
    %10 = vector.shape_cast %9 : vector<1x1x64xf32> to vector<64xf32>
    %11 = vector.shape_cast %10 : vector<64xf32> to vector<1x64xf32>
    %12 = vector.broadcast %11 : vector<1x64xf32> to vector<18x64xf32>
    %13 = arith.mulf %8, %12 : vector<18x64xf32>
    %14 = arith.addf %7, %13 : vector<18x64xf32>
    %15 = vector.extract_strided_slice %1 {offsets = [0, 4], sizes = [18, 64], strides = [1, 1]} : vector<20x72xf32> to vector<18x64xf32>
    %c0_7 = arith.constant 0 : index
    %c1_8 = arith.constant 1 : index
    %c0_9 = arith.constant 0 : index
    %16 = vector.load %arg2[%c0_7, %c1_8, %c0_9] : memref<3x3x64xf32, #tpu.memory_space<vmem>>, vector<1x1x64xf32>
    %17 = vector.shape_cast %16 : vector<1x1x64xf32> to vector<64xf32>
    %18 = vector.shape_cast %17 : vector<64xf32> to vector<1x64xf32>
    %19 = vector.broadcast %18 : vector<1x64xf32> to vector<18x64xf32>
    %20 = arith.mulf %15, %19 : vector<18x64xf32>
    %21 = arith.addf %14, %20 : vector<18x64xf32>
    %22 = vector.extract_strided_slice %1 {offsets = [0, 8], sizes = [18, 64], strides = [1, 1]} : vector<20x72xf32> to vector<18x64xf32>
    %c0_10 = arith.constant 0 : index
    %c2 = arith.constant 2 : index
    %c0_11 = arith.constant 0 : index
    %23 = vector.load %arg2[%c0_10, %c2, %c0_11] : memref<3x3x64xf32, #tpu.memory_space<vmem>>, vector<1x1x64xf32>
    %24 = vector.shape_cast %23 : vector<1x1x64xf32> to vector<64xf32>
    %25 = vector.shape_cast %24 : vector<64xf32> to vector<1x64xf32>
    %26 = vector.broadcast %25 : vector<1x64xf32> to vector<18x64xf32>
    %27 = arith.mulf %22, %26 : vector<18x64xf32>
    %28 = arith.addf %21, %27 : vector<18x64xf32>
    %29 = vector.extract_strided_slice %1 {offsets = [1, 0], sizes = [18, 64], strides = [1, 1]} : vector<20x72xf32> to vector<18x64xf32>
    %c1_12 = arith.constant 1 : index
    %c0_13 = arith.constant 0 : index
    %c0_14 = arith.constant 0 : index
    %30 = vector.load %arg2[%c1_12, %c0_13, %c0_14] : memref<3x3x64xf32, #tpu.memory_space<vmem>>, vector<1x1x64xf32>
    %31 = vector.shape_cast %30 : vector<1x1x64xf32> to vector<64xf32>
    %32 = vector.shape_cast %31 : vector<64xf32> to vector<1x64xf32>
    %33 = vector.broadcast %32 : vector<1x64xf32> to vector<18x64xf32>
    %34 = arith.mulf %29, %33 : vector<18x64xf32>
    %35 = arith.addf %28, %34 : vector<18x64xf32>
    %36 = vector.extract_strided_slice %1 {offsets = [1, 8], sizes = [18, 64], strides = [1, 1]} : vector<20x72xf32> to vector<18x64xf32>
    %c1_15 = arith.constant 1 : index
    %c2_16 = arith.constant 2 : index
    %c0_17 = arith.constant 0 : index
    %37 = vector.load %arg2[%c1_15, %c2_16, %c0_17] : memref<3x3x64xf32, #tpu.memory_space<vmem>>, vector<1x1x64xf32>
    %38 = vector.shape_cast %37 : vector<1x1x64xf32> to vector<64xf32>
    %39 = vector.shape_cast %38 : vector<64xf32> to vector<1x64xf32>
    %40 = vector.broadcast %39 : vector<1x64xf32> to vector<18x64xf32>
    %41 = arith.mulf %36, %40 : vector<18x64xf32>
    %42 = arith.addf %35, %41 : vector<18x64xf32>
    %43 = vector.extract_strided_slice %1 {offsets = [2, 0], sizes = [18, 64], strides = [1, 1]} : vector<20x72xf32> to vector<18x64xf32>
    %c2_18 = arith.constant 2 : index
    %c0_19 = arith.constant 0 : index
    %c0_20 = arith.constant 0 : index
    %44 = vector.load %arg2[%c2_18, %c0_19, %c0_20] : memref<3x3x64xf32, #tpu.memory_space<vmem>>, vector<1x1x64xf32>
    %45 = vector.shape_cast %44 : vector<1x1x64xf32> to vector<64xf32>
    %46 = vector.shape_cast %45 : vector<64xf32> to vector<1x64xf32>
    %47 = vector.broadcast %46 : vector<1x64xf32> to vector<18x64xf32>
    %48 = arith.mulf %43, %47 : vector<18x64xf32>
    %49 = arith.addf %42, %48 : vector<18x64xf32>
    %50 = vector.extract_strided_slice %1 {offsets = [2, 4], sizes = [18, 64], strides = [1, 1]} : vector<20x72xf32> to vector<18x64xf32>
    %c2_21 = arith.constant 2 : index
    %c1_22 = arith.constant 1 : index
    %c0_23 = arith.constant 0 : index
    %51 = vector.load %arg2[%c2_21, %c1_22, %c0_23] : memref<3x3x64xf32, #tpu.memory_space<vmem>>, vector<1x1x64xf32>
    %52 = vector.shape_cast %51 : vector<1x1x64xf32> to vector<64xf32>
    %53 = vector.shape_cast %52 : vector<64xf32> to vector<1x64xf32>
    %54 = vector.broadcast %53 : vector<1x64xf32> to vector<18x64xf32>
    %55 = arith.mulf %50, %54 : vector<18x64xf32>
    %56 = arith.addf %49, %55 : vector<18x64xf32>
    %57 = vector.extract_strided_slice %1 {offsets = [2, 8], sizes = [18, 64], strides = [1, 1]} : vector<20x72xf32> to vector<18x64xf32>
    %c2_24 = arith.constant 2 : index
    %c2_25 = arith.constant 2 : index
    %c0_26 = arith.constant 0 : index
    %58 = vector.load %arg2[%c2_24, %c2_25, %c0_26] : memref<3x3x64xf32, #tpu.memory_space<vmem>>, vector<1x1x64xf32>
    %59 = vector.shape_cast %58 : vector<1x1x64xf32> to vector<64xf32>
    %60 = vector.shape_cast %59 : vector<64xf32> to vector<1x64xf32>
    %61 = vector.broadcast %60 : vector<1x64xf32> to vector<18x64xf32>
    %62 = arith.mulf %57, %61 : vector<18x64xf32>
    %63 = arith.addf %56, %62 : vector<18x64xf32>
    %64 = arith.truncf %63 : vector<18x64xf32> to vector<18x64xbf16>
    %c0_27 = arith.constant 0 : index
    %c0_28 = arith.constant 0 : index
    %65 = vector.load %arg3[%c0_27, %c0_28] : memref<64x144xbf16, #tpu.memory_space<vmem>>, vector<64x144xbf16>
    %cst = arith.constant dense<0.000000e+00> : vector<18x144xf32>
    %66 = tpu.matmul %64, %65, %cst {dimension_numbers = #tpu.dot_dimension_numbers<[1], [0], [0], [1], [0, 0, 1, 1], [], []>} : vector<18x64xbf16>, vector<64x144xbf16>, vector<18x144xf32> -> vector<18x144xf32>
    %c0_29 = arith.constant 0 : index
    %c0_30 = arith.constant 0 : index
    %67 = vector.load %arg4[%c0_29, %c0_30] : memref<1x144xf32, #tpu.memory_space<vmem>>, vector<1x144xf32>
    %68 = vector.shape_cast %67 : vector<1x144xf32> to vector<144xf32>
    %69 = vector.shape_cast %68 : vector<144xf32> to vector<1x144xf32>
    %70 = vector.broadcast %69 : vector<1x144xf32> to vector<18x144xf32>
    %71 = arith.addf %66, %70 : vector<18x144xf32>
    %cst_31 = arith.constant 0.000000e+00 : f32
    %72 = vector.broadcast %cst_31 : f32 to vector<18x144xf32>
    %73 = arith.maximumf %71, %72 : vector<18x144xf32>
    %74 = tpu.iota {dimensions = array<i32: 0>} : vector<18x1xi32>
    %c1_i32 = arith.constant 1 : i32
    %75 = vector.broadcast %c1_i32 : i32 to vector<18x1xi32>
    %76 = arith.cmpi sge, %74, %75 : vector<18x1xi32>
    %c16_i32 = arith.constant 16 : i32
    %77 = vector.broadcast %c16_i32 : i32 to vector<18x1xi32>
    %78 = arith.cmpi sle, %74, %77 : vector<18x1xi32>
    %79 = arith.andi %76, %78 : vector<18x1xi1>
    %cst_32 = arith.constant 0.000000e+00 : f32
    %80 = vector.shape_cast %79 : vector<18x1xi1> to vector<18x1xi1>
    %81 = vector.broadcast %80 : vector<18x1xi1> to vector<18x144xi1>
    %82 = vector.broadcast %cst_32 : f32 to vector<18x144xf32>
    %83 = arith.select %81, %73, %82 : vector<18x144xi1>, vector<18x144xf32>
    %84 = vector.extract_strided_slice %83 {offsets = [1, 8], sizes = [16, 128], strides = [1, 1]} : vector<18x144xf32> to vector<16x128xf32>
    %c1_33 = arith.constant 1 : index
    %c1_34 = arith.constant 1 : index
    %c0_35 = arith.constant 0 : index
    %85 = vector.load %arg5[%c1_33, %c1_34, %c0_35] : memref<3x3x128xf32, #tpu.memory_space<vmem>>, vector<1x1x128xf32>
    %86 = vector.shape_cast %85 : vector<1x1x128xf32> to vector<128xf32>
    %87 = vector.shape_cast %86 : vector<128xf32> to vector<1x128xf32>
    %88 = vector.broadcast %87 : vector<1x128xf32> to vector<16x128xf32>
    %89 = arith.mulf %84, %88 : vector<16x128xf32>
    %90 = vector.extract_strided_slice %83 {offsets = [0, 0], sizes = [16, 128], strides = [1, 1]} : vector<18x144xf32> to vector<16x128xf32>
    %c0_36 = arith.constant 0 : index
    %c0_37 = arith.constant 0 : index
    %c0_38 = arith.constant 0 : index
    %91 = vector.load %arg5[%c0_36, %c0_37, %c0_38] : memref<3x3x128xf32, #tpu.memory_space<vmem>>, vector<1x1x128xf32>
    %92 = vector.shape_cast %91 : vector<1x1x128xf32> to vector<128xf32>
    %93 = vector.shape_cast %92 : vector<128xf32> to vector<1x128xf32>
    %94 = vector.broadcast %93 : vector<1x128xf32> to vector<16x128xf32>
    %95 = arith.mulf %90, %94 : vector<16x128xf32>
    %96 = arith.addf %89, %95 : vector<16x128xf32>
    %97 = vector.extract_strided_slice %83 {offsets = [0, 8], sizes = [16, 128], strides = [1, 1]} : vector<18x144xf32> to vector<16x128xf32>
    %c0_39 = arith.constant 0 : index
    %c1_40 = arith.constant 1 : index
    %c0_41 = arith.constant 0 : index
    %98 = vector.load %arg5[%c0_39, %c1_40, %c0_41] : memref<3x3x128xf32, #tpu.memory_space<vmem>>, vector<1x1x128xf32>
    %99 = vector.shape_cast %98 : vector<1x1x128xf32> to vector<128xf32>
    %100 = vector.shape_cast %99 : vector<128xf32> to vector<1x128xf32>
    %101 = vector.broadcast %100 : vector<1x128xf32> to vector<16x128xf32>
    %102 = arith.mulf %97, %101 : vector<16x128xf32>
    %103 = arith.addf %96, %102 : vector<16x128xf32>
    %104 = vector.extract_strided_slice %83 {offsets = [0, 16], sizes = [16, 128], strides = [1, 1]} : vector<18x144xf32> to vector<16x128xf32>
    %c0_42 = arith.constant 0 : index
    %c2_43 = arith.constant 2 : index
    %c0_44 = arith.constant 0 : index
    %105 = vector.load %arg5[%c0_42, %c2_43, %c0_44] : memref<3x3x128xf32, #tpu.memory_space<vmem>>, vector<1x1x128xf32>
    %106 = vector.shape_cast %105 : vector<1x1x128xf32> to vector<128xf32>
    %107 = vector.shape_cast %106 : vector<128xf32> to vector<1x128xf32>
    %108 = vector.broadcast %107 : vector<1x128xf32> to vector<16x128xf32>
    %109 = arith.mulf %104, %108 : vector<16x128xf32>
    %110 = arith.addf %103, %109 : vector<16x128xf32>
    %111 = vector.extract_strided_slice %83 {offsets = [1, 0], sizes = [16, 128], strides = [1, 1]} : vector<18x144xf32> to vector<16x128xf32>
    %c1_45 = arith.constant 1 : index
    %c0_46 = arith.constant 0 : index
    %c0_47 = arith.constant 0 : index
    %112 = vector.load %arg5[%c1_45, %c0_46, %c0_47] : memref<3x3x128xf32, #tpu.memory_space<vmem>>, vector<1x1x128xf32>
    %113 = vector.shape_cast %112 : vector<1x1x128xf32> to vector<128xf32>
    %114 = vector.shape_cast %113 : vector<128xf32> to vector<1x128xf32>
    %115 = vector.broadcast %114 : vector<1x128xf32> to vector<16x128xf32>
    %116 = arith.mulf %111, %115 : vector<16x128xf32>
    %117 = arith.addf %110, %116 : vector<16x128xf32>
    %118 = vector.extract_strided_slice %83 {offsets = [1, 16], sizes = [16, 128], strides = [1, 1]} : vector<18x144xf32> to vector<16x128xf32>
    %c1_48 = arith.constant 1 : index
    %c2_49 = arith.constant 2 : index
    %c0_50 = arith.constant 0 : index
    %119 = vector.load %arg5[%c1_48, %c2_49, %c0_50] : memref<3x3x128xf32, #tpu.memory_space<vmem>>, vector<1x1x128xf32>
    %120 = vector.shape_cast %119 : vector<1x1x128xf32> to vector<128xf32>
    %121 = vector.shape_cast %120 : vector<128xf32> to vector<1x128xf32>
    %122 = vector.broadcast %121 : vector<1x128xf32> to vector<16x128xf32>
    %123 = arith.mulf %118, %122 : vector<16x128xf32>
    %124 = arith.addf %117, %123 : vector<16x128xf32>
    %125 = vector.extract_strided_slice %83 {offsets = [2, 0], sizes = [16, 128], strides = [1, 1]} : vector<18x144xf32> to vector<16x128xf32>
    %c2_51 = arith.constant 2 : index
    %c0_52 = arith.constant 0 : index
    %c0_53 = arith.constant 0 : index
    %126 = vector.load %arg5[%c2_51, %c0_52, %c0_53] : memref<3x3x128xf32, #tpu.memory_space<vmem>>, vector<1x1x128xf32>
    %127 = vector.shape_cast %126 : vector<1x1x128xf32> to vector<128xf32>
    %128 = vector.shape_cast %127 : vector<128xf32> to vector<1x128xf32>
    %129 = vector.broadcast %128 : vector<1x128xf32> to vector<16x128xf32>
    %130 = arith.mulf %125, %129 : vector<16x128xf32>
    %131 = arith.addf %124, %130 : vector<16x128xf32>
    %132 = vector.extract_strided_slice %83 {offsets = [2, 8], sizes = [16, 128], strides = [1, 1]} : vector<18x144xf32> to vector<16x128xf32>
    %c2_54 = arith.constant 2 : index
    %c1_55 = arith.constant 1 : index
    %c0_56 = arith.constant 0 : index
    %133 = vector.load %arg5[%c2_54, %c1_55, %c0_56] : memref<3x3x128xf32, #tpu.memory_space<vmem>>, vector<1x1x128xf32>
    %134 = vector.shape_cast %133 : vector<1x1x128xf32> to vector<128xf32>
    %135 = vector.shape_cast %134 : vector<128xf32> to vector<1x128xf32>
    %136 = vector.broadcast %135 : vector<1x128xf32> to vector<16x128xf32>
    %137 = arith.mulf %132, %136 : vector<16x128xf32>
    %138 = arith.addf %131, %137 : vector<16x128xf32>
    %139 = vector.extract_strided_slice %83 {offsets = [2, 16], sizes = [16, 128], strides = [1, 1]} : vector<18x144xf32> to vector<16x128xf32>
    %c2_57 = arith.constant 2 : index
    %c2_58 = arith.constant 2 : index
    %c0_59 = arith.constant 0 : index
    %140 = vector.load %arg5[%c2_57, %c2_58, %c0_59] : memref<3x3x128xf32, #tpu.memory_space<vmem>>, vector<1x1x128xf32>
    %141 = vector.shape_cast %140 : vector<1x1x128xf32> to vector<128xf32>
    %142 = vector.shape_cast %141 : vector<128xf32> to vector<1x128xf32>
    %143 = vector.broadcast %142 : vector<1x128xf32> to vector<16x128xf32>
    %144 = arith.mulf %139, %143 : vector<16x128xf32>
    %145 = arith.addf %138, %144 : vector<16x128xf32>
    %146 = arith.truncf %145 : vector<16x128xf32> to vector<16x128xbf16>
    %c0_60 = arith.constant 0 : index
    %c0_61 = arith.constant 0 : index
    %147 = vector.load %arg6[%c0_60, %c0_61] : memref<128x128xbf16, #tpu.memory_space<vmem>>, vector<128x128xbf16>
    %cst_62 = arith.constant dense<0.000000e+00> : vector<16x128xf32>
    %148 = tpu.matmul %146, %147, %cst_62 {dimension_numbers = #tpu.dot_dimension_numbers<[1], [0], [0], [1], [0, 0, 1, 1], [], []>} : vector<16x128xbf16>, vector<128x128xbf16>, vector<16x128xf32> -> vector<16x128xf32>
    %c0_63 = arith.constant 0 : index
    %c0_64 = arith.constant 0 : index
    %149 = vector.load %arg7[%c0_63, %c0_64] : memref<1x128xf32, #tpu.memory_space<vmem>>, vector<1x128xf32>
    %150 = vector.shape_cast %149 : vector<1x128xf32> to vector<128xf32>
    %151 = vector.shape_cast %150 : vector<128xf32> to vector<1x128xf32>
    %152 = vector.broadcast %151 : vector<1x128xf32> to vector<16x128xf32>
    %153 = arith.addf %148, %152 : vector<16x128xf32>
    %cst_65 = arith.constant 0.000000e+00 : f32
    %154 = vector.broadcast %cst_65 : f32 to vector<16x128xf32>
    %155 = arith.maximumf %153, %154 : vector<16x128xf32>
    %c0_66 = arith.constant 0 : index
    %c0_67 = arith.constant 0 : index
    %c0_68 = arith.constant 0 : index
    %156 = vector.load %arg8[%c0_66, %c0_67, %c0_68] : memref<1x16x128xf32, #tpu.memory_space<vmem>>, vector<1x16x128xf32>
    %157 = vector.shape_cast %156 : vector<1x16x128xf32> to vector<16x128xf32>
    %158 = vector.shape_cast %155 : vector<16x128xf32> to vector<1x16x128xf32>
    tpu.vector_store %arg8[%c0_66, %c0_67, %c0_68], %158 {strides = array<i32>} : memref<1x16x128xf32, #tpu.memory_space<vmem>>, vector<1x16x128xf32>,
    return
  }
  func.func @transform_0(%arg0: i32) -> (i32, i32, i32) {
    %c0_i32 = arith.constant 0 : i32
    %c0_i32_0 = arith.constant 0 : i32
    %c0_i32_1 = arith.constant 0 : i32
    return %arg0, %c0_i32, %c0_i32_0 : i32, i32, i32
  }
  func.func @transform_1(%arg0: i32) -> (i32, i32, i32) {
    %c0_i32 = arith.constant 0 : i32
    %c0_i32_0 = arith.constant 0 : i32
    %c0_i32_1 = arith.constant 0 : i32
    %c0_i32_2 = arith.constant 0 : i32
    return %c0_i32, %c0_i32_0, %c0_i32_1 : i32, i32, i32
  }
  func.func @transform_2(%arg0: i32) -> (i32, i32) {
    %c0_i32 = arith.constant 0 : i32
    %c0_i32_0 = arith.constant 0 : i32
    %c0_i32_1 = arith.constant 0 : i32
    return %c0_i32, %c0_i32_0 : i32, i32
  }
  func.func @transform_3(%arg0: i32) -> (i32, i32) {
    %c0_i32 = arith.constant 0 : i32
    %c0_i32_0 = arith.constant 0 : i32
    %c0_i32_1 = arith.constant 0 : i32
    return %c0_i32, %c0_i32_0 : i32, i32
  }
  func.func @transform_4(%arg0: i32) -> (i32, i32, i32) {
    %c0_i32 = arith.constant 0 : i32
    %c0_i32_0 = arith.constant 0 : i32
    %c0_i32_1 = arith.constant 0 : i32
    %c0_i32_2 = arith.constant 0 : i32
    return %c0_i32, %c0_i32_0, %c0_i32_1 : i32, i32, i32
  }
  func.func @transform_5(%arg0: i32) -> (i32, i32) {
    %c0_i32 = arith.constant 0 : i32
    %c0_i32_0 = arith.constant 0 : i32
    %c0_i32_1 = arith.constant 0 : i32
    return %c0_i32, %c0_i32_0 : i32, i32
  }
  func.func @transform_6(%arg0: i32) -> (i32, i32) {
    %c0_i32 = arith.constant 0 : i32
    %c0_i32_0 = arith.constant 0 : i32
    %c0_i32_1 = arith.constant 0 : i32
    return %c0_i32, %c0_i32_0 : i32, i32
  }
  func.func @transform_7(%arg0: i32) -> (i32, i32, i32) {
    %c0_i32 = arith.constant 0 : i32
    %c0_i32_0 = arith.constant 0 : i32
    %c0_i32_1 = arith.constant 0 : i32
    return %arg0, %c0_i32, %c0_i32_0 : i32, i32, i32
  }
}

</mosaic_0001>

<llo_original>
// kernel: tile.28
$region0: #{tile.28}
  #allocation0 [shape = 's32[1]{0}', space=sflag, size = 0x4, scoped, tag = 'scoped memory for tile.28']
  %s0 = inlined_call_operand.vmem [shape: f32[8], index: 0, kind: input, shape index: {}]
  %s1 = inlined_call_operand.vmem [shape: f32[16,8], index: 1, kind: output, shape index: {}]
  // Predicated region
  $region2: #{tile.28} parent=0 // pred_check
    _
  $region3: #{tile.28} parent=0 // pred_check_branch
    %3 = sbr.rel (0) target = $region5
  $region4: #{tile.28} parent=0 // pred_region
    _
  $region5: #{tile.28} parent=0 // pred_fallthru
    _
  %v4 = vld [vmem:[%s0] ss:$0 sm:$0xff]
  %5 = vst [vmem:[%s1] sm:$0xff] %v4
  %s6 = scalar_lea.vmem %s1, 8
  %7 = vst [vmem:[%s6] sm:$0xff] %v4

// kernel: tile.29
$region0: #{tile.29}
  %s0 = inlined_call_operand.vmem [shape: f32[16,8], index: 0, kind: input, shape index: {}]
  %s1 = inlined_call_operand.vmem [shape: f32[128], index: 1, kind: output, shape index: {}]
  $region1: #{tile.29} parent=0
    #allocation0 [shape = 'u8[4096]{0}', space=vmem, size = 0x1000, scoped, tag = 'scoped mem for output reshape']
    %v2 = vld [vmem:[%s0] sm:$0x1]
    %vm3 = vcmask 64512
    %4 = vst.msk [vmem:[#allocation0] sm:$0x1] %vm3, %v2
    %s5 = scalar_lea.vmem %s0, 15
    %v6 = vld [vmem:[%s5] sm:$0x1]
    %7 = vrot.lane.b32.xlu0 %v6, 120
    %v8 = vpop.permute.xlu0 %7
    %vm9 = vcmask 1048512
    %10 = vst.msk [vmem:[#allocation0] sm:$0x1] %vm9, %v8
    %s11 = scalar_lea.vmem %s0, 14
    %v12 = vld [vmem:[%s11] sm:$0x1]
    %13 = vrot.lane.b32.xlu0 %v12, 112
    %v14 = vpop.permute.xlu0 %13
    %vm15 = vcmask 982912
    %16 = vst.msk [vmem:[#allocation0] sm:$0x1] %vm15, %v14
    %s17 = scalar_lea.vmem %s0, 13
    %v18 = vld [vmem:[%s17] sm:$0x1]
    %19 = vrot.lane.b32.xlu0 %v18, 104
    %v20 = vpop.permute.xlu0 %19
    %vm21 = vcmask 917312
    %22 = vst.msk [vmem:[#allocation0] sm:$0x1] %vm21, %v20
    %s23 = scalar_lea.vmem %s0, 12
    %v24 = vld [vmem:[%s23] sm:$0x1]
    %25 = vrot.lane.b32.xlu0 %v24, 96
    %v26 = vpop.permute.xlu0 %25
    %vm27 = vcmask 851712
    %28 = vst.msk [vmem:[#allocation0] sm:$0x1] %vm27, %v26
    %s29 = scalar_lea.vmem %s0, 11
    %v30 = vld [vmem:[%s29] sm:$0x1]
    %31 = vrot.lane.b32.xlu0 %v30, 88
    %v32 = vpop.permute.xlu0 %31
    %vm33 = vcmask 786112
    %34 = vst.msk [vmem:[#allocation0] sm:$0x1] %vm33, %v32
    %s35 = scalar_lea.vmem %s0, 10
    %v36 = vld [vmem:[%s35] sm:$0x1]
    %37 = vrot.lane.b32.xlu0 %v36, 80
    %v38 = vpop.permute.xlu0 %37
    %vm39 = vcmask 720512
    %40 = vst.msk [vmem:[#allocation0] sm:$0x1] %vm39, %v38
    %s41 = scalar_lea.vmem %s0, 9
    %v42 = vld [vmem:[%s41] sm:$0x1]
    %43 = vrot.lane.b32.xlu0 %v42, 72
    %v44 = vpop.permute.xlu0 %43
    %vm45 = vcmask 654912
    %46 = vst.msk [vmem:[#allocation0] sm:$0x1] %vm45, %v44
    %s47 = scalar_lea.vmem %s0, 8
    %v48 = vld [vmem:[%s47] sm:$0x1]
    %49 = vrot.lane.b32.xlu0 %v48, 64
    %v50 = vpop.permute.xlu0 %49
    %vm51 = vcmask 589312
    %52 = vst.msk [vmem:[#allocation0] sm:$0x1] %vm51, %v50
    %s53 = scalar_lea.vmem %s0, 7
    %v54 = vld [vmem:[%s53] sm:$0x1]
    %55 = vrot.lane.b32.xlu0 %v54, 56
    %v56 = vpop.permute.xlu0 %55
    %vm57 = vcmask 523712
    %58 = vst.msk [vmem:[#allocation0] sm:$0x1] %vm57, %v56
    %s59 = scalar_lea.vmem %s0, 6
    %v60 = vld [vmem:[%s59] sm:$0x1]
    %61 = vrot.lane.b32.xlu0 %v60, 48
    %v62 = vpop.permute.xlu0 %61
    %vm63 = vcmask 458112
    %64 = vst.msk [vmem:[#allocation0] sm:$0x1] %vm63, %v62
    %s65 = scalar_lea.vmem %s0, 5
    %v66 = vld [vmem:[%s65] sm:$0x1]
    %67 = vrot.lane.b32.xlu0 %v66, 40
    %v68 = vpop.permute.xlu0 %67
    %vm69 = vcmask 392512
    %70 = vst.msk [vmem:[#allocation0] sm:$0x1] %vm69, %v68
    %s71 = scalar_lea.vmem %s0, 4
    %v72 = vld [vmem:[%s71] sm:$0x1]
    %73 = vrot.lane.b32.xlu0 %v72, 32
    %v74 = vpop.permute.xlu0 %73
    %vm75 = vcmask 326912
    %76 = vst.msk [vmem:[#allocation0] sm:$0x1] %vm75, %v74
    %s77 = scalar_lea.vmem %s0, 3
    %v78 = vld [vmem:[%s77] sm:$0x1]
    %79 = vrot.lane.b32.xlu0 %v78, 24
    %v80 = vpop.permute.xlu0 %79
    %vm81 = vcmask 261312
    %82 = vst.msk [vmem:[#allocation0] sm:$0x1] %vm81, %v80
    %s83 = scalar_lea.vmem %s0, 2
    %v84 = vld [vmem:[%s83] sm:$0x1]
    %85 = vrot.lane.b32.xlu0 %v84, 16
    %v86 = vpop.permute.xlu0 %85
    %vm87 = vcmask 195712
    %88 = vst.msk [vmem:[#allocation0] sm:$0x1] %vm87, %v86
    %s89 = scalar_lea.vmem %s0, 1
    %v90 = vld [vmem:[%s89] sm:$0x1]
    %91 = vrot.lane.b32.xlu0 %v90, 8
    %v92 = vpop.permute.xlu0 %91
    %vm93 = vcmask 130112
    %94 = vst.msk [vmem:[#allocation0] sm:$0x1] %vm93, %v92
    %s96 = sshll.u32 1, 1
    %s97 = ssub.s32 %s96, 1
    %v99 = vld [vmem:[#allocation0] sm:%s97]
    %s100 = sshll.u32 1, 1
    %s101 = ssub.s32 %s100, 1
    %102 = vst [vmem:[%s1] sm:%s101] %v99

// kernel: tile.39
$region0: #{tile.39}
  %s0 = inlined_call_operand.vmem [shape: f32[16,8], index: 0, kind: input, shape index: {}]
  %s1 = inlined_call_operand.vmem [shape: f32[1,128], index: 1, kind: output, shape index: {}]
  $region1: #{tile.39} parent=0
    #allocation0 [shape = 'u8[4096]{0}', space=vmem, size = 0x1000, scoped, tag = 'scoped mem for output reshape']
    %v2 = vld [vmem:[%s0] sm:$0x1]
    %vm3 = vcmask 64512
    %4 = vst.msk [vmem:[#allocation0] sm:$0x1] %vm3, %v2
    %s5 = scalar_lea.vmem %s0, 15
    %v6 = vld [vmem:[%s5] sm:$0x1]
    %7 = vrot.lane.b32.xlu0 %v6, 120
    %v8 = vpop.permute.xlu0 %7
    %vm9 = vcmask 1048512
    %10 = vst.msk [vmem:[#allocation0] sm:$0x1] %vm9, %v8
    %s11 = scalar_lea.vmem %s0, 14
    %v12 = vld [vmem:[%s11] sm:$0x1]
    %13 = vrot.lane.b32.xlu0 %v12, 112
    %v14 = vpop.permute.xlu0 %13
    %vm15 = vcmask 982912
    %16 = vst.msk [vmem:[#allocation0] sm:$0x1] %vm15, %v14
    %s17 = scalar_lea.vmem %s0, 13
    %v18 = vld [vmem:[%s17] sm:$0x1]
    %19 = vrot.lane.b32.xlu0 %v18, 104
    %v20 = vpop.permute.xlu0 %19
    %vm21 = vcmask 917312
    %22 = vst.msk [vmem:[#allocation0] sm:$0x1] %vm21, %v20
    %s23 = scalar_lea.vmem %s0, 12
    %v24 = vld [vmem:[%s23] sm:$0x1]
    %25 = vrot.lane.b32.xlu0 %v24, 96
    %v26 = vpop.permute.xlu0 %25
    %vm27 = vcmask 851712
    %28 = vst.msk [vmem:[#allocation0] sm:$0x1] %vm27, %v26
    %s29 = scalar_lea.vmem %s0, 11
    %v30 = vld [vmem:[%s29] sm:$0x1]
    %31 = vrot.lane.b32.xlu0 %v30, 88
    %v32 = vpop.permute.xlu0 %31
    %vm33 = vcmask 786112
    %34 = vst.msk [vmem:[#allocation0] sm:$0x1] %vm33, %v32
    %s35 = scalar_lea.vmem %s0, 10
    %v36 = vld [vmem:[%s35] sm:$0x1]
    %37 = vrot.lane.b32.xlu0 %v36, 80
    %v38 = vpop.permute.xlu0 %37
    %vm39 = vcmask 720512
    %40 = vst.msk [vmem:[#allocation0] sm:$0x1] %vm39, %v38
    %s41 = scalar_lea.vmem %s0, 9
    %v42 = vld [vmem:[%s41] sm:$0x1]
    %43 = vrot.lane.b32.xlu0 %v42, 72
    %v44 = vpop.permute.xlu0 %43
    %vm45 = vcmask 654912
    %46 = vst.msk [vmem:[#allocation0] sm:$0x1] %vm45, %v44
    %s47 = scalar_lea.vmem %s0, 8
    %v48 = vld [vmem:[%s47] sm:$0x1]
    %49 = vrot.lane.b32.xlu0 %v48, 64
    %v50 = vpop.permute.xlu0 %49
    %vm51 = vcmask 589312
    %52 = vst.msk [vmem:[#allocation0] sm:$0x1] %vm51, %v50
    %s53 = scalar_lea.vmem %s0, 7
    %v54 = vld [vmem:[%s53] sm:$0x1]
    %55 = vrot.lane.b32.xlu0 %v54, 56
    %v56 = vpop.permute.xlu0 %55
    %vm57 = vcmask 523712
    %58 = vst.msk [vmem:[#allocation0] sm:$0x1] %vm57, %v56
    %s59 = scalar_lea.vmem %s0, 6
    %v60 = vld [vmem:[%s59] sm:$0x1]
    %61 = vrot.lane.b32.xlu0 %v60, 48
    %v62 = vpop.permute.xlu0 %61
    %vm63 = vcmask 458112
    %64 = vst.msk [vmem:[#allocation0] sm:$0x1] %vm63, %v62
    %s65 = scalar_lea.vmem %s0, 5
    %v66 = vld [vmem:[%s65] sm:$0x1]
    %67 = vrot.lane.b32.xlu0 %v66, 40
    %v68 = vpop.permute.xlu0 %67
    %vm69 = vcmask 392512
    %70 = vst.msk [vmem:[#allocation0] sm:$0x1] %vm69, %v68
    %s71 = scalar_lea.vmem %s0, 4
    %v72 = vld [vmem:[%s71] sm:$0x1]
    %73 = vrot.lane.b32.xlu0 %v72, 32
    %v74 = vpop.permute.xlu0 %73
    %vm75 = vcmask 326912
    %76 = vst.msk [vmem:[#allocation0] sm:$0x1] %vm75, %v74
    %s77 = scalar_lea.vmem %s0, 3
    %v78 = vld [vmem:[%s77] sm:$0x1]
    %79 = vrot.lane.b32.xlu0 %v78, 24
    %v80 = vpop.permute.xlu0 %79
    %vm81 = vcmask 261312
    %82 = vst.msk [vmem:[#allocation0] sm:$0x1] %vm81, %v80
    %s83 = scalar_lea.vmem %s0, 2
    %v84 = vld [vmem:[%s83] sm:$0x1]
    %85 = vrot.lane.b32.xlu0 %v84, 16
    %v86 = vpop.permute.xlu0 %85
    %vm87 = vcmask 195712
    %88 = vst.msk [vmem:[#allocation0] sm:$0x1] %vm87, %v86
    %s89 = scalar_lea.vmem %s0, 1
    %v90 = vld [vmem:[%s89] sm:$0x1]
    %91 = vrot.lane.b32.xlu0 %v90, 8
    %v92 = vpop.permute.xlu0 %91
    %vm93 = vcmask 130112
    %94 = vst.msk [vmem:[#allocation0] sm:$0x1] %vm93, %v92
    %s96 = sshll.u32 1, 1
    %s97 = ssub.s32 %s96, 1
    %v99 = vld [vmem:[#allocation0] sm:%s97]
    %s100 = sshll.u32 1, 1
    %s101 = ssub.s32 %s100, 1
    %102 = vst [vmem:[%s1] sm:%s101] %v99

// kernel: tile.34
$region0: #{tile.34}
  %s0 = inlined_call_operand.vmem [shape: f32[3,3,16,8], index: 0, kind: input, shape index: {}]
  %s1 = inlined_call_operand.vmem [shape: f32[3,3,128], index: 1, kind: output, shape index: {}]
  $region1: #{tile.34} parent=0
    #allocation0 [shape = 'u8[12288]{0}', space=vmem, size = 0x3000, scoped, tag = 'scoped mem for output reshape']
    %s2 = smov 3
    %v3 = vld [vmem:[%s0] ss:$16 sm:%s2]
    %s4 = smov 12
    %v5 = vld [vmem:[%s0] ss:$16 sm:%s4]
    %vm6 = vcmask 1043458
    %v7 = vsel %vm6, %v5, %v3
    %s8 = smov 48
    %v9 = vld [vmem:[%s0] ss:$16 sm:%s8]
    %vm10 = vcmask 1045508
    %v11 = vsel %vm10, %v9, %v7
    %s12 = smov 192
    %v13 = vld [vmem:[%s0] ss:$16 sm:%s12]
    %vm14 = vcmask 1047558
    %v15 = vsel %vm14, %v13, %v11
    %vm16 = vcmask 64512
    %17 = vst.msk [vmem:[#allocation0] sm:$0x7] %vm16, %v15
    %s18 = scalar_lea.vmem [#allocation0], 5
    %19 = vst.msk [vmem:[%s18] sm:$0x38] %vm16, %v15
    %s20 = scalar_lea.vmem [#allocation0], 10
    %21 = vst.msk [vmem:[%s20] sm:$0xc0] %vm16, %v15
    %s22 = scalar_lea.vmem %s0, 128
    %v23 = vld [vmem:[%s22] sm:$0x1]
    %vm24 = vcmask 64512
    %s25 = scalar_lea.vmem [#allocation0], 18
    %26 = vst.msk [vmem:[%s25] sm:$0x1] %vm24, %v23
    %s27 = scalar_lea.vmem %s0, 15
    %s28 = smov 3
    %v29 = vld [vmem:[%s27] ss:$16 sm:%s28]
    %s30 = scalar_lea.vmem %s0, 15
    %s31 = smov 12
    %v32 = vld [vmem:[%s30] ss:$16 sm:%s31]
    %vm33 = vcmask 1043458
    %v34 = vsel %vm33, %v32, %v29
    %s35 = scalar_lea.vmem %s0, 15
    %s36 = smov 48
    %v37 = vld [vmem:[%s35] ss:$16 sm:%s36]
    %vm38 = vcmask 1045508
    %v39 = vsel %vm38, %v37, %v34
    %s40 = scalar_lea.vmem %s0, 15
    %s41 = smov 192
    %v42 = vld [vmem:[%s40] ss:$16 sm:%s41]
    %vm43 = vcmask 1047558
    %v44 = vsel %vm43, %v42, %v39
    %45 = vrot.lane.b32.xlu0 %v44, 120
    %v46 = vpop.permute.xlu0 %45
    %vm47 = vcmask 1048512
    %48 = vst.msk [vmem:[#allocation0] sm:$0x7] %vm47, %v46
    %s49 = scalar_lea.vmem [#allocation0], 5
    %50 = vst.msk [vmem:[%s49] sm:$0x38] %vm47, %v46
    %s51 = scalar_lea.vmem [#allocation0], 10
    %52 = vst.msk [vmem:[%s51] sm:$0xc0] %vm47, %v46
    %s53 = scalar_lea.vmem %s0, 143
    %v54 = vld [vmem:[%s53] sm:$0x1]
    %55 = vrot.lane.b32.xlu0 %v54, 120
    %v56 = vpop.permute.xlu0 %55
    %vm57 = vcmask 1048512
    %s58 = scalar_lea.vmem [#allocation0], 18
    %59 = vst.msk [vmem:[%s58] sm:$0x1] %vm57, %v56
    %s60 = scalar_lea.vmem %s0, 14
    %s61 = smov 3
    %v62 = vld [vmem:[%s60] ss:$16 sm:%s61]
    %s63 = scalar_lea.vmem %s0, 14
    %s64 = smov 12
    %v65 = vld [vmem:[%s63] ss:$16 sm:%s64]
    %vm66 = vcmask 1043458
    %v67 = vsel %vm66, %v65, %v62
    %s68 = scalar_lea.vmem %s0, 14
    %s69 = smov 48
    %v70 = vld [vmem:[%s68] ss:$16 sm:%s69]
    %vm71 = vcmask 1045508
    %v72 = vsel %vm71, %v70, %v67
    %s73 = scalar_lea.vmem %s0, 14
    %s74 = smov 192
    %v75 = vld [vmem:[%s73] ss:$16 sm:%s74]
    %vm76 = vcmask 1047558
    %v77 = vsel %vm76, %v75, %v72
    %78 = vrot.lane.b32.xlu0 %v77, 112
    %v79 = vpop.permute.xlu0 %78
    %vm80 = vcmask 982912
    %81 = vst.msk [vmem:[#allocation0] sm:$0x7] %vm80, %v79
    %s82 = scalar_lea.vmem [#allocation0], 5
    %83 = vst.msk [vmem:[%s82] sm:$0x38] %vm80, %v79
    %s84 = scalar_lea.vmem [#allocation0], 10
    %85 = vst.msk [vmem:[%s84] sm:$0xc0] %vm80, %v79
    %s86 = scalar_lea.vmem %s0, 142
    %v87 = vld [vmem:[%s86] sm:$0x1]
    %88 = vrot.lane.b32.xlu0 %v87, 112
    %v89 = vpop.permute.xlu0 %88
    %vm90 = vcmask 982912
    %s91 = scalar_lea.vmem [#allocation0], 18
    %92 = vst.msk [vmem:[%s91] sm:$0x1] %vm90, %v89
    %s93 = scalar_lea.vmem %s0, 13
    %s94 = smov 3
    %v95 = vld [vmem:[%s93] ss:$16 sm:%s94]
    %s96 = scalar_lea.vmem %s0, 13
    %s97 = smov 12
    %v98 = vld [vmem:[%s96] ss:$16 sm:%s97]
    %vm99 = vcmask 1043458
    %v100 = vsel %vm99, %v98, %v95
    %s101 = scalar_lea.vmem %s0, 13
    %s102 = smov 48
    %v103 = vld [vmem:[%s101] ss:$16 sm:%s102]
    %vm104 = vcmask 1045508
    %v105 = vsel %vm104, %v103, %v100
    %s106 = scalar_lea.vmem %s0, 13
    %s107 = smov 192
    %v108 = vld [vmem:[%s106] ss:$16 sm:%s107]
    %vm109 = vcmask 1047558
    %v110 = vsel %vm109, %v108, %v105
    %111 = vrot.lane.b32.xlu0 %v110, 104
    %v112 = vpop.permute.xlu0 %111
    %vm113 = vcmask 917312
    %114 = vst.msk [vmem:[#allocation0] sm:$0x7] %vm113, %v112
    %s115 = scalar_lea.vmem [#allocation0], 5
    %116 = vst.msk [vmem:[%s115] sm:$0x38] %vm113, %v112
    %s117 = scalar_lea.vmem [#allocation0], 10
    %118 = vst.msk [vmem:[%s117] sm:$0xc0] %vm113, %v112
    %s119 = scalar_lea.vmem %s0, 141
    %v120 = vld [vmem:[%s119] sm:$0x1]
    %121 = vrot.lane.b32.xlu0 %v120, 104
    %v122 = vpop.permute.xlu0 %121
    %vm123 = vcmask 917312
    %s124 = scalar_lea.vmem [#allocation0], 18
    %125 = vst.msk [vmem:[%s124] sm:$0x1] %vm123, %v122
    %s126 = scalar_lea.vmem %s0, 12
    %s127 = smov 3
    %v128 = vld [vmem:[%s126] ss:$16 sm:%s127]
    %s129 = scalar_lea.vmem %s0, 12
    %s130 = smov 12
    %v131 = vld [vmem:[%s129] ss:$16 sm:%s130]
    %vm132 = vcmask 1043458
    %v133 = vsel %vm132, %v131, %v128
    %s134 = scalar_lea.vmem %s0, 12
    %s135 = smov 48
    %v136 = vld [vmem:[%s134] ss:$16 sm:%s135]
    %vm137 = vcmask 1045508
    %v138 = vsel %vm137, %v136, %v133
    %s139 = scalar_lea.vmem %s0, 12
    %s140 = smov 192
    %v141 = vld [vmem:[%s139] ss:$16 sm:%s140]
    %vm142 = vcmask 1047558
    %v143 = vsel %vm142, %v141, %v138
    %144 = vrot.lane.b32.xlu0 %v143, 96
    %v145 = vpop.permute.xlu0 %144
    %vm146 = vcmask 851712
    %147 = vst.msk [vmem:[#allocation0] sm:$0x7] %vm146, %v145
    %s148 = scalar_lea.vmem [#allocation0], 5
    %149 = vst.msk [vmem:[%s148] sm:$0x38] %vm146, %v145
    %s150 = scalar_lea.vmem [#allocation0], 10
    %151 = vst.msk [vmem:[%s150] sm:$0xc0] %vm146, %v145
    %s152 = scalar_lea.vmem %s0, 140
    %v153 = vld [vmem:[%s152] sm:$0x1]
    %154 = vrot.lane.b32.xlu0 %v153, 96
    %v155 = vpop.permute.xlu0 %154
    %vm156 = vcmask 851712
    %s157 = scalar_lea.vmem [#allocation0], 18
    %158 = vst.msk [vmem:[%s157] sm:$0x1] %vm156, %v155
    %s159 = scalar_lea.vmem %s0, 11
    %s160 = smov 3
    %v161 = vld [vmem:[%s159] ss:$16 sm:%s160]
    %s162 = scalar_lea.vmem %s0, 11
    %s163 = smov 12
    %v164 = vld [vmem:[%s162] ss:$16 sm:%s163]
    %vm165 = vcmask 1043458
    %v166 = vsel %vm165, %v164, %v161
    %s167 = scalar_lea.vmem %s0, 11
    %s168 = smov 48
    %v169 = vld [vmem:[%s167] ss:$16 sm:%s168]
    %vm170 = vcmask 1045508
    %v171 = vsel %vm170, %v169, %v166
    %s172 = scalar_lea.vmem %s0, 11
    %s173 = smov 192
    %v174 = vld [vmem:[%s172] ss:$16 sm:%s173]
    %vm175 = vcmask 1047558
    %v176 = vsel %vm175, %v174, %v171
    %177 = vrot.lane.b32.xlu0 %v176, 88
    %v178 = vpop.permute.xlu0 %177
    %vm179 = vcmask 786112
    %180 = vst.msk [vmem:[#allocation0] sm:$0x7] %vm179, %v178
    %s181 = scalar_lea.vmem [#allocation0], 5
    %182 = vst.msk [vmem:[%s181] sm:$0x38] %vm179, %v178
    %s183 = scalar_lea.vmem [#allocation0], 10
    %184 = vst.msk [vmem:[%s183] sm:$0xc0] %vm179, %v178
    %s185 = scalar_lea.vmem %s0, 139
    %v186 = vld [vmem:[%s185] sm:$0x1]
    %187 = vrot.lane.b32.xlu0 %v186, 88
    %v188 = vpop.permute.xlu0 %187
    %vm189 = vcmask 786112
    %s190 = scalar_lea.vmem [#allocation0], 18
    %191 = vst.msk [vmem:[%s190] sm:$0x1] %vm189, %v188
    %s192 = scalar_lea.vmem %s0, 10
    %s193 = smov 3
    %v194 = vld [vmem:[%s192] ss:$16 sm:%s193]
    %s195 = scalar_lea.vmem %s0, 10
    %s196 = smov 12
    %v197 = vld [vmem:[%s195] ss:$16 sm:%s196]
    %vm198 = vcmask 1043458
    %v199 = vsel %vm198, %v197, %v194
    %s200 = scalar_lea.vmem %s0, 10
    %s201 = smov 48
    %v202 = vld [vmem:[%s200] ss:$16 sm:%s201]
    %vm203 = vcmask 1045508
    %v204 = vsel %vm203, %v202, %v199
    %s205 = scalar_lea.vmem %s0, 10
    %s206 = smov 192
    %v207 = vld [vmem:[%s205] ss:$16 sm:%s206]
    %vm208 = vcmask 1047558
    %v209 = vsel %vm208, %v207, %v204
    %210 = vrot.lane.b32.xlu0 %v209, 80
    %v211 = vpop.permute.xlu0 %210
    %vm212 = vcmask 720512
    %213 = vst.msk [vmem:[#allocation0] sm:$0x7] %vm212, %v211
    %s214 = scalar_lea.vmem [#allocation0], 5
    %215 = vst.msk [vmem:[%s214] sm:$0x38] %vm212, %v211
    %s216 = scalar_lea.vmem [#allocation0], 10
    %217 = vst.msk [vmem:[%s216] sm:$0xc0] %vm212, %v211
    %s218 = scalar_lea.vmem %s0, 138
    %v219 = vld [vmem:[%s218] sm:$0x1]
    %220 = vrot.lane.b32.xlu0 %v219, 80
    %v221 = vpop.permute.xlu0 %220
    %vm222 = vcmask 720512
    %s223 = scalar_lea.vmem [#allocation0], 18
    %224 = vst.msk [vmem:[%s223] sm:$0x1] %vm222, %v221
    %s225 = scalar_lea.vmem %s0, 9
    %s226 = smov 3
    %v227 = vld [vmem:[%s225] ss:$16 sm:%s226]
    %s228 = scalar_lea.vmem %s0, 9
    %s229 = smov 12
    %v230 = vld [vmem:[%s228] ss:$16 sm:%s229]
    %vm231 = vcmask 1043458
    %v232 = vsel %vm231, %v230, %v227
    %s233 = scalar_lea.vmem %s0, 9
    %s234 = smov 48
    %v235 = vld [vmem:[%s233] ss:$16 sm:%s234]
    %vm236 = vcmask 1045508
    %v237 = vsel %vm236, %v235, %v232
    %s238 = scalar_lea.vmem %s0, 9
    %s239 = smov 192
    %v240 = vld [vmem:[%s238] ss:$16 sm:%s239]
    %vm241 = vcmask 1047558
    %v242 = vsel %vm241, %v240, %v237
    %243 = vrot.lane.b32.xlu0 %v242, 72
    %v244 = vpop.permute.xlu0 %243
    %vm245 = vcmask 654912
    %246 = vst.msk [vmem:[#allocation0] sm:$0x7] %vm245, %v244
    %s247 = scalar_lea.vmem [#allocation0], 5
    %248 = vst.msk [vmem:[%s247] sm:$0x38] %vm245, %v244
    %s249 = scalar_lea.vmem [#allocation0], 10
    %250 = vst.msk [vmem:[%s249] sm:$0xc0] %vm245, %v244
    %s251 = scalar_lea.vmem %s0, 137
    %v252 = vld [vmem:[%s251] sm:$0x1]
    %253 = vrot.lane.b32.xlu0 %v252, 72
    %v254 = vpop.permute.xlu0 %253
    %vm255 = vcmask 654912
    %s256 = scalar_lea.vmem [#allocation0], 18
    %257 = vst.msk [vmem:[%s256] sm:$0x1] %vm255, %v254
    %s258 = scalar_lea.vmem %s0, 8
    %s259 = smov 3
    %v260 = vld [vmem:[%s258] ss:$16 sm:%s259]
    %s261 = scalar_lea.vmem %s0, 8
    %s262 = smov 12
    %v263 = vld [vmem:[%s261] ss:$16 sm:%s262]
    %vm264 = vcmask 1043458
    %v265 = vsel %vm264, %v263, %v260
    %s266 = scalar_lea.vmem %s0, 8
    %s267 = smov 48
    %v268 = vld [vmem:[%s266] ss:$16 sm:%s267]
    %vm269 = vcmask 1045508
    %v270 = vsel %vm269, %v268, %v265
    %s271 = scalar_lea.vmem %s0, 8
    %s272 = smov 192
    %v273 = vld [vmem:[%s271] ss:$16 sm:%s272]
    %vm274 = vcmask 1047558
    %v275 = vsel %vm274, %v273, %v270
    %276 = vrot.lane.b32.xlu0 %v275, 64
    %v277 = vpop.permute.xlu0 %276
    %vm278 = vcmask 589312
    %279 = vst.msk [vmem:[#allocation0] sm:$0x7] %vm278, %v277
    %s280 = scalar_lea.vmem [#allocation0], 5
    %281 = vst.msk [vmem:[%s280] sm:$0x38] %vm278, %v277
    %s282 = scalar_lea.vmem [#allocation0], 10
    %283 = vst.msk [vmem:[%s282] sm:$0xc0] %vm278, %v277
    %s284 = scalar_lea.vmem %s0, 136
    %v285 = vld [vmem:[%s284] sm:$0x1]
    %286 = vrot.lane.b32.xlu0 %v285, 64
    %v287 = vpop.permute.xlu0 %286
    %vm288 = vcmask 589312
    %s289 = scalar_lea.vmem [#allocation0], 18
    %290 = vst.msk [vmem:[%s289] sm:$0x1] %vm288, %v287
    %s291 = scalar_lea.vmem %s0, 7
    %s292 = smov 3
    %v293 = vld [vmem:[%s291] ss:$16 sm:%s292]
    %s294 = scalar_lea.vmem %s0, 7
    %s295 = smov 12
    %v296 = vld [vmem:[%s294] ss:$16 sm:%s295]
    %vm297 = vcmask 1043458
    %v298 = vsel %vm297, %v296, %v293
    %s299 = scalar_lea.vmem %s0, 7
    %s300 = smov 48
    %v301 = vld [vmem:[%s299] ss:$16 sm:%s300]
    %vm302 = vcmask 1045508
    %v303 = vsel %vm302, %v301, %v298
    %s304 = scalar_lea.vmem %s0, 7
    %s305 = smov 192
    %v306 = vld [vmem:[%s304] ss:$16 sm:%s305]
    %vm307 = vcmask 1047558
    %v308 = vsel %vm307, %v306, %v303
    %309 = vrot.lane.b32.xlu0 %v308, 56
    %v310 = vpop.permute.xlu0 %309
    %vm311 = vcmask 523712
    %312 = vst.msk [vmem:[#allocation0] sm:$0x7] %vm311, %v310
    %s313 = scalar_lea.vmem [#allocation0], 5
    %314 = vst.msk [vmem:[%s313] sm:$0x38] %vm311, %v310
    %s315 = scalar_lea.vmem [#allocation0], 10
    %316 = vst.msk [vmem:[%s315] sm:$0xc0] %vm311, %v310
    %s317 = scalar_lea.vmem %s0, 135
    %v318 = vld [vmem:[%s317] sm:$0x1]
    %319 = vrot.lane.b32.xlu0 %v318, 56
    %v320 = vpop.permute.xlu0 %319
    %vm321 = vcmask 523712
    %s322 = scalar_lea.vmem [#allocation0], 18
    %323 = vst.msk [vmem:[%s322] sm:$0x1] %vm321, %v320
    %s324 = scalar_lea.vmem %s0, 6
    %s325 = smov 3
    %v326 = vld [vmem:[%s324] ss:$16 sm:%s325]
    %s327 = scalar_lea.vmem %s0, 6
    %s328 = smov 12
    %v329 = vld [vmem:[%s327] ss:$16 sm:%s328]
    %vm330 = vcmask 1043458
    %v331 = vsel %vm330, %v329, %v326
    %s332 = scalar_lea.vmem %s0, 6
    %s333 = smov 48
    %v334 = vld [vmem:[%s332] ss:$16 sm:%s333]
    %vm335 = vcmask 1045508
    %v336 = vsel %vm335, %v334, %v331
    %s337 = scalar_lea.vmem %s0, 6
    %s338 = smov 192
    %v339 = vld [vmem:[%s337] ss:$16 sm:%s338]
    %vm340 = vcmask 1047558
    %v341 = vsel %vm340, %v339, %v336
    %342 = vrot.lane.b32.xlu0 %v341, 48
    %v343 = vpop.permute.xlu0 %342
    %vm344 = vcmask 458112
    %345 = vst.msk [vmem:[#allocation0] sm:$0x7] %vm344, %v343
    %s346 = scalar_lea.vmem [#allocation0], 5
    %347 = vst.msk [vmem:[%s346] sm:$0x38] %vm344, %v343
    %s348 = scalar_lea.vmem [#allocation0], 10
    %349 = vst.msk [vmem:[%s348] sm:$0xc0] %vm344, %v343
    %s350 = scalar_lea.vmem %s0, 134
    %v351 = vld [vmem:[%s350] sm:$0x1]
    %352 = vrot.lane.b32.xlu0 %v351, 48
    %v353 = vpop.permute.xlu0 %352
    %vm354 = vcmask 458112
    %s355 = scalar_lea.vmem [#allocation0], 18
    %356 = vst.msk [vmem:[%s355] sm:$0x1] %vm354, %v353
    %s357 = scalar_lea.vmem %s0, 5
    %s358 = smov 3
    %v359 = vld [vmem:[%s357] ss:$16 sm:%s358]
    %s360 = scalar_lea.vmem %s0, 5
    %s361 = smov 12
    %v362 = vld [vmem:[%s360] ss:$16 sm:%s361]
    %vm363 = vcmask 1043458
    %v364 = vsel %vm363, %v362, %v359
    %s365 = scalar_lea.vmem %s0, 5
    %s366 = smov 48
    %v367 = vld [vmem:[%s365] ss:$16 sm:%s366]
    %vm368 = vcmask 1045508
    %v369 = vsel %vm368, %v367, %v364
    %s370 = scalar_lea.vmem %s0, 5
    %s371 = smov 192
    %v372 = vld [vmem:[%s370] ss:$16 sm:%s371]
    %vm373 = vcmask 1047558
    %v374 = vsel %vm373, %v372, %v369
    %375 = vrot.lane.b32.xlu0 %v374, 40
    %v376 = vpop.permute.xlu0 %375
    %vm377 = vcmask 392512
    %378 = vst.msk [vmem:[#allocation0] sm:$0x7] %vm377, %v376
    %s379 = scalar_lea.vmem [#allocation0], 5
    %380 = vst.msk [vmem:[%s379] sm:$0x38] %vm377, %v376
    %s381 = scalar_lea.vmem [#allocation0], 10
    %382 = vst.msk [vmem:[%s381] sm:$0xc0] %vm377, %v376
    %s383 = scalar_lea.vmem %s0, 133
    %v384 = vld [vmem:[%s383] sm:$0x1]
    %385 = vrot.lane.b32.xlu0 %v384, 40
    %v386 = vpop.permute.xlu0 %385
    %vm387 = vcmask 392512
    %s388 = scalar_lea.vmem [#allocation0], 18
    %389 = vst.msk [vmem:[%s388] sm:$0x1] %vm387, %v386
    %s390 = scalar_lea.vmem %s0, 4
    %s391 = smov 3
    %v392 = vld [vmem:[%s390] ss:$16 sm:%s391]
    %s393 = scalar_lea.vmem %s0, 4
    %s394 = smov 12
    %v395 = vld [vmem:[%s393] ss:$16 sm:%s394]
    %vm396 = vcmask 1043458
    %v397 = vsel %vm396, %v395, %v392
    %s398 = scalar_lea.vmem %s0, 4
    %s399 = smov 48
    %v400 = vld [vmem:[%s398] ss:$16 sm:%s399]
    %vm401 = vcmask 1045508
    %v402 = vsel %vm401, %v400, %v397
    %s403 = scalar_lea.vmem %s0, 4
    %s404 = smov 192
    %v405 = vld [vmem:[%s403] ss:$16 sm:%s404]
    %vm406 = vcmask 1047558
    %v407 = vsel %vm406, %v405, %v402
    %408 = vrot.lane.b32.xlu0 %v407, 32
    %v409 = vpop.permute.xlu0 %408
    %vm410 = vcmask 326912
    %411 = vst.msk [vmem:[#allocation0] sm:$0x7] %vm410, %v409
    %s412 = scalar_lea.vmem [#allocation0], 5
    %413 = vst.msk [vmem:[%s412] sm:$0x38] %vm410, %v409
    %s414 = scalar_lea.vmem [#allocation0], 10
    %415 = vst.msk [vmem:[%s414] sm:$0xc0] %vm410, %v409
    %s416 = scalar_lea.vmem %s0, 132
    %v417 = vld [vmem:[%s416] sm:$0x1]
    %418 = vrot.lane.b32.xlu0 %v417, 32
    %v419 = vpop.permute.xlu0 %418
    %vm420 = vcmask 326912
    %s421 = scalar_lea.vmem [#allocation0], 18
    %422 = vst.msk [vmem:[%s421] sm:$0x1] %vm420, %v419
    %s423 = scalar_lea.vmem %s0, 3
    %s424 = smov 3
    %v425 = vld [vmem:[%s423] ss:$16 sm:%s424]
    %s426 = scalar_lea.vmem %s0, 3
    %s427 = smov 12
    %v428 = vld [vmem:[%s426] ss:$16 sm:%s427]
    %vm429 = vcmask 1043458
    %v430 = vsel %vm429, %v428, %v425
    %s431 = scalar_lea.vmem %s0, 3
    %s432 = smov 48
    %v433 = vld [vmem:[%s431] ss:$16 sm:%s432]
    %vm434 = vcmask 1045508
    %v435 = vsel %vm434, %v433, %v430
    %s436 = scalar_lea.vmem %s0, 3
    %s437 = smov 192
    %v438 = vld [vmem:[%s436] ss:$16 sm:%s437]
    %vm439 = vcmask 1047558
    %v440 = vsel %vm439, %v438, %v435
    %441 = vrot.lane.b32.xlu0 %v440, 24
    %v442 = vpop.permute.xlu0 %441
    %vm443 = vcmask 261312
    %444 = vst.msk [vmem:[#allocation0] sm:$0x7] %vm443, %v442
    %s445 = scalar_lea.vmem [#allocation0], 5
    %446 = vst.msk [vmem:[%s445] sm:$0x38] %vm443, %v442
    %s447 = scalar_lea.vmem [#allocation0], 10
    %448 = vst.msk [vmem:[%s447] sm:$0xc0] %vm443, %v442
    %s449 = scalar_lea.vmem %s0, 131
    %v450 = vld [vmem:[%s449] sm:$0x1]
    %451 = vrot.lane.b32.xlu0 %v450, 24
    %v452 = vpop.permute.xlu0 %451
    %vm453 = vcmask 261312
    %s454 = scalar_lea.vmem [#allocation0], 18
    %455 = vst.msk [vmem:[%s454] sm:$0x1] %vm453, %v452
    %s456 = scalar_lea.vmem %s0, 2
    %s457 = smov 3
    %v458 = vld [vmem:[%s456] ss:$16 sm:%s457]
    %s459 = scalar_lea.vmem %s0, 2
    %s460 = smov 12
    %v461 = vld [vmem:[%s459] ss:$16 sm:%s460]
    %vm462 = vcmask 1043458
    %v463 = vsel %vm462, %v461, %v458
    %s464 = scalar_lea.vmem %s0, 2
    %s465 = smov 48
    %v466 = vld [vmem:[%s464] ss:$16 sm:%s465]
    %vm467 = vcmask 1045508
    %v468 = vsel %vm467, %v466, %v463
    %s469 = scalar_lea.vmem %s0, 2
    %s470 = smov 192
    %v471 = vld [vmem:[%s469] ss:$16 sm:%s470]
    %vm472 = vcmask 1047558
    %v473 = vsel %vm472, %v471, %v468
    %474 = vrot.lane.b32.xlu0 %v473, 16
    %v475 = vpop.permute.xlu0 %474
    %vm476 = vcmask 195712
    %477 = vst.msk [vmem:[#allocation0] sm:$0x7] %vm476, %v475
    %s478 = scalar_lea.vmem [#allocation0], 5
    %479 = vst.msk [vmem:[%s478] sm:$0x38] %vm476, %v475
    %s480 = scalar_lea.vmem [#allocation0], 10
    %481 = vst.msk [vmem:[%s480] sm:$0xc0] %vm476, %v475
    %s482 = scalar_lea.vmem %s0, 130
    %v483 = vld [vmem:[%s482] sm:$0x1]
    %484 = vrot.lane.b32.xlu0 %v483, 16
    %v485 = vpop.permute.xlu0 %484
    %vm486 = vcmask 195712
    %s487 = scalar_lea.vmem [#allocation0], 18
    %488 = vst.msk [vmem:[%s487] sm:$0x1] %vm486, %v485
    %s489 = scalar_lea.vmem %s0, 1
    %s490 = smov 3
    %v491 = vld [vmem:[%s489] ss:$16 sm:%s490]
    %s492 = scalar_lea.vmem %s0, 1
    %s493 = smov 12
    %v494 = vld [vmem:[%s492] ss:$16 sm:%s493]
    %vm495 = vcmask 1043458
    %v496 = vsel %vm495, %v494, %v491
    %s497 = scalar_lea.vmem %s0, 1
    %s498 = smov 48
    %v499 = vld [vmem:[%s497] ss:$16 sm:%s498]
    %vm500 = vcmask 1045508
    %v501 = vsel %vm500, %v499, %v496
    %s502 = scalar_lea.vmem %s0, 1
    %s503 = smov 192
    %v504 = vld [vmem:[%s502] ss:$16 sm:%s503]
    %vm505 = vcmask 1047558
    %v506 = vsel %vm505, %v504, %v501
    %507 = vrot.lane.b32.xlu0 %v506, 8
    %v508 = vpop.permute.xlu0 %507
    %vm509 = vcmask 130112
    %510 = vst.msk [vmem:[#allocation0] sm:$0x7] %vm509, %v508
    %s511 = scalar_lea.vmem [#allocation0], 5
    %512 = vst.msk [vmem:[%s511] sm:$0x38] %vm509, %v508
    %s513 = scalar_lea.vmem [#allocation0], 10
    %514 = vst.msk [vmem:[%s513] sm:$0xc0] %vm509, %v508
    %s515 = scalar_lea.vmem %s0, 129
    %v516 = vld [vmem:[%s515] sm:$0x1]
    %517 = vrot.lane.b32.xlu0 %v516, 8
    %v518 = vpop.permute.xlu0 %517
    %vm519 = vcmask 130112
    %s520 = scalar_lea.vmem [#allocation0], 18
    %521 = vst.msk [vmem:[%s520] sm:$0x1] %vm519, %v518
    %s523 = sshll.u32 1, 4
    %s524 = ssub.s32 %s523, 1
    %v526 = vld [vmem:[#allocation0] sm:%s524]
    %s527 = sshll.u32 1, 4
    %s528 = ssub.s32 %s527, 1
    %529 = vst [vmem:[%s1] sm:%s528] %v526
    %s530 = scalar_lea.vmem [#allocation0], 8
    %v531 = vld [vmem:[%s530] sm:%s524]
    %s532 = sshll.u32 1, 4
    %s533 = ssub.s32 %s532, 1
    %s534 = scalar_lea.vmem %s1, 4
    %535 = vst [vmem:[%s534] sm:%s533] %v531
    %s536 = scalar_lea.vmem [#allocation0], 16
    %v537 = vld [vmem:[%s536] sm:%s524]
    %s538 = sshll.u32 1, 4
    %s539 = ssub.s32 %s538, 1
    %s540 = smul.addr 4, 2
    %s541 = scalar_lea.vmem %s1, %s540
    %542 = vst [vmem:[%s541] sm:%s539] %v537

// kernel: tile.24
$region0: #{tile.24}
  %s0 = inlined_call_operand.vmem [shape: f32[3,3,16,4], index: 0, kind: input, shape index: {}]
  %s1 = inlined_call_operand.vmem [shape: f32[3,3,64], index: 1, kind: output, shape index: {}]
  $region1: #{tile.24} parent=0
    #allocation0 [shape = 'u8[12288]{0}', space=vmem, size = 0x3000, scoped, tag = 'scoped mem for output reshape']
    %s2 = smov 3
    %v3 = vld [vmem:[%s0] ss:$16 sm:%s2]
    %s4 = smov 12
    %v5 = vld [vmem:[%s0] ss:$16 sm:%s4]
    %vm6 = vcmask 1043458
    %v7 = vsel %vm6, %v5, %v3
    %s8 = smov 48
    %v9 = vld [vmem:[%s0] ss:$16 sm:%s8]
    %vm10 = vcmask 1045508
    %v11 = vsel %vm10, %v9, %v7
    %s12 = smov 192
    %v13 = vld [vmem:[%s0] ss:$16 sm:%s12]
    %vm14 = vcmask 1047558
    %v15 = vsel %vm14, %v13, %v11
    %vm16 = vcmask 31744
    %17 = vst.msk [vmem:[#allocation0] sm:$0x7] %vm16, %v15
    %s18 = scalar_lea.vmem [#allocation0], 5
    %19 = vst.msk [vmem:[%s18] sm:$0x38] %vm16, %v15
    %s20 = scalar_lea.vmem [#allocation0], 10
    %21 = vst.msk [vmem:[%s20] sm:$0xc0] %vm16, %v15
    %s22 = scalar_lea.vmem %s0, 128
    %v23 = vld [vmem:[%s22] sm:$0x1]
    %vm24 = vcmask 31744
    %s25 = scalar_lea.vmem [#allocation0], 18
    %26 = vst.msk [vmem:[%s25] sm:$0x1] %vm24, %v23
    %s27 = scalar_lea.vmem %s0, 15
    %s28 = smov 3
    %v29 = vld [vmem:[%s27] ss:$16 sm:%s28]
    %s30 = scalar_lea.vmem %s0, 15
    %s31 = smov 12
    %v32 = vld [vmem:[%s30] ss:$16 sm:%s31]
    %vm33 = vcmask 1043458
    %v34 = vsel %vm33, %v32, %v29
    %s35 = scalar_lea.vmem %s0, 15
    %s36 = smov 48
    %v37 = vld [vmem:[%s35] ss:$16 sm:%s36]
    %vm38 = vcmask 1045508
    %v39 = vsel %vm38, %v37, %v34
    %s40 = scalar_lea.vmem %s0, 15
    %s41 = smov 192
    %v42 = vld [vmem:[%s40] ss:$16 sm:%s41]
    %vm43 = vcmask 1047558
    %v44 = vsel %vm43, %v42, %v39
    %45 = vrot.lane.b32.xlu0 %v44, 60
    %v46 = vpop.permute.xlu0 %45
    %vm47 = vcmask 523744
    %48 = vst.msk [vmem:[#allocation0] sm:$0x7] %vm47, %v46
    %s49 = scalar_lea.vmem [#allocation0], 5
    %50 = vst.msk [vmem:[%s49] sm:$0x38] %vm47, %v46
    %s51 = scalar_lea.vmem [#allocation0], 10
    %52 = vst.msk [vmem:[%s51] sm:$0xc0] %vm47, %v46
    %s53 = scalar_lea.vmem %s0, 143
    %v54 = vld [vmem:[%s53] sm:$0x1]
    %55 = vrot.lane.b32.xlu0 %v54, 60
    %v56 = vpop.permute.xlu0 %55
    %vm57 = vcmask 523744
    %s58 = scalar_lea.vmem [#allocation0], 18
    %59 = vst.msk [vmem:[%s58] sm:$0x1] %vm57, %v56
    %s60 = scalar_lea.vmem %s0, 14
    %s61 = smov 3
    %v62 = vld [vmem:[%s60] ss:$16 sm:%s61]
    %s63 = scalar_lea.vmem %s0, 14
    %s64 = smov 12
    %v65 = vld [vmem:[%s63] ss:$16 sm:%s64]
    %vm66 = vcmask 1043458
    %v67 = vsel %vm66, %v65, %v62
    %s68 = scalar_lea.vmem %s0, 14
    %s69 = smov 48
    %v70 = vld [vmem:[%s68] ss:$16 sm:%s69]
    %vm71 = vcmask 1045508
    %v72 = vsel %vm71, %v70, %v67
    %s73 = scalar_lea.vmem %s0, 14
    %s74 = smov 192
    %v75 = vld [vmem:[%s73] ss:$16 sm:%s74]
    %vm76 = vcmask 1047558
    %v77 = vsel %vm76, %v75, %v72
    %78 = vrot.lane.b32.xlu0 %v77, 56
    %v79 = vpop.permute.xlu0 %78
    %vm80 = vcmask 490944
    %81 = vst.msk [vmem:[#allocation0] sm:$0x7] %vm80, %v79
    %s82 = scalar_lea.vmem [#allocation0], 5
    %83 = vst.msk [vmem:[%s82] sm:$0x38] %vm80, %v79
    %s84 = scalar_lea.vmem [#allocation0], 10
    %85 = vst.msk [vmem:[%s84] sm:$0xc0] %vm80, %v79
    %s86 = scalar_lea.vmem %s0, 142
    %v87 = vld [vmem:[%s86] sm:$0x1]
    %88 = vrot.lane.b32.xlu0 %v87, 56
    %v89 = vpop.permute.xlu0 %88
    %vm90 = vcmask 490944
    %s91 = scalar_lea.vmem [#allocation0], 18
    %92 = vst.msk [vmem:[%s91] sm:$0x1] %vm90, %v89
    %s93 = scalar_lea.vmem %s0, 13
    %s94 = smov 3
    %v95 = vld [vmem:[%s93] ss:$16 sm:%s94]
    %s96 = scalar_lea.vmem %s0, 13
    %s97 = smov 12
    %v98 = vld [vmem:[%s96] ss:$16 sm:%s97]
    %vm99 = vcmask 1043458
    %v100 = vsel %vm99, %v98, %v95
    %s101 = scalar_lea.vmem %s0, 13
    %s102 = smov 48
    %v103 = vld [vmem:[%s101] ss:$16 sm:%s102]
    %vm104 = vcmask 1045508
    %v105 = vsel %vm104, %v103, %v100
    %s106 = scalar_lea.vmem %s0, 13
    %s107 = smov 192
    %v108 = vld [vmem:[%s106] ss:$16 sm:%s107]
    %vm109 = vcmask 1047558
    %v110 = vsel %vm109, %v108, %v105
    %111 = vrot.lane.b32.xlu0 %v110, 52
    %v112 = vpop.permute.xlu0 %111
    %vm113 = vcmask 458144
    %114 = vst.msk [vmem:[#allocation0] sm:$0x7] %vm113, %v112
    %s115 = scalar_lea.vmem [#allocation0], 5
    %116 = vst.msk [vmem:[%s115] sm:$0x38] %vm113, %v112
    %s117 = scalar_lea.vmem [#allocation0], 10
    %118 = vst.msk [vmem:[%s117] sm:$0xc0] %vm113, %v112
    %s119 = scalar_lea.vmem %s0, 141
    %v120 = vld [vmem:[%s119] sm:$0x1]
    %121 = vrot.lane.b32.xlu0 %v120, 52
    %v122 = vpop.permute.xlu0 %121
    %vm123 = vcmask 458144
    %s124 = scalar_lea.vmem [#allocation0], 18
    %125 = vst.msk [vmem:[%s124] sm:$0x1] %vm123, %v122
    %s126 = scalar_lea.vmem %s0, 12
    %s127 = smov 3
    %v128 = vld [vmem:[%s126] ss:$16 sm:%s127]
    %s129 = scalar_lea.vmem %s0, 12
    %s130 = smov 12
    %v131 = vld [vmem:[%s129] ss:$16 sm:%s130]
    %vm132 = vcmask 1043458
    %v133 = vsel %vm132, %v131, %v128
    %s134 = scalar_lea.vmem %s0, 12
    %s135 = smov 48
    %v136 = vld [vmem:[%s134] ss:$16 sm:%s135]
    %vm137 = vcmask 1045508
    %v138 = vsel %vm137, %v136, %v133
    %s139 = scalar_lea.vmem %s0, 12
    %s140 = smov 192
    %v141 = vld [vmem:[%s139] ss:$16 sm:%s140]
    %vm142 = vcmask 1047558
    %v143 = vsel %vm142, %v141, %v138
    %144 = vrot.lane.b32.xlu0 %v143, 48
    %v145 = vpop.permute.xlu0 %144
    %vm146 = vcmask 425344
    %147 = vst.msk [vmem:[#allocation0] sm:$0x7] %vm146, %v145
    %s148 = scalar_lea.vmem [#allocation0], 5
    %149 = vst.msk [vmem:[%s148] sm:$0x38] %vm146, %v145
    %s150 = scalar_lea.vmem [#allocation0], 10
    %151 = vst.msk [vmem:[%s150] sm:$0xc0] %vm146, %v145
    %s152 = scalar_lea.vmem %s0, 140
    %v153 = vld [vmem:[%s152] sm:$0x1]
    %154 = vrot.lane.b32.xlu0 %v153, 48
    %v155 = vpop.permute.xlu0 %154
    %vm156 = vcmask 425344
    %s157 = scalar_lea.vmem [#allocation0], 18
    %158 = vst.msk [vmem:[%s157] sm:$0x1] %vm156, %v155
    %s159 = scalar_lea.vmem %s0, 11
    %s160 = smov 3
    %v161 = vld [vmem:[%s159] ss:$16 sm:%s160]
    %s162 = scalar_lea.vmem %s0, 11
    %s163 = smov 12
    %v164 = vld [vmem:[%s162] ss:$16 sm:%s163]
    %vm165 = vcmask 1043458
    %v166 = vsel %vm165, %v164, %v161
    %s167 = scalar_lea.vmem %s0, 11
    %s168 = smov 48
    %v169 = vld [vmem:[%s167] ss:$16 sm:%s168]
    %vm170 = vcmask 1045508
    %v171 = vsel %vm170, %v169, %v166
    %s172 = scalar_lea.vmem %s0, 11
    %s173 = smov 192
    %v174 = vld [vmem:[%s172] ss:$16 sm:%s173]
    %vm175 = vcmask 1047558
    %v176 = vsel %vm175, %v174, %v171
    %177 = vrot.lane.b32.xlu0 %v176, 44
    %v178 = vpop.permute.xlu0 %177
    %vm179 = vcmask 392544
    %180 = vst.msk [vmem:[#allocation0] sm:$0x7] %vm179, %v178
    %s181 = scalar_lea.vmem [#allocation0], 5
    %182 = vst.msk [vmem:[%s181] sm:$0x38] %vm179, %v178
    %s183 = scalar_lea.vmem [#allocation0], 10
    %184 = vst.msk [vmem:[%s183] sm:$0xc0] %vm179, %v178
    %s185 = scalar_lea.vmem %s0, 139
    %v186 = vld [vmem:[%s185] sm:$0x1]
    %187 = vrot.lane.b32.xlu0 %v186, 44
    %v188 = vpop.permute.xlu0 %187
    %vm189 = vcmask 392544
    %s190 = scalar_lea.vmem [#allocation0], 18
    %191 = vst.msk [vmem:[%s190] sm:$0x1] %vm189, %v188
    %s192 = scalar_lea.vmem %s0, 10
    %s193 = smov 3
    %v194 = vld [vmem:[%s192] ss:$16 sm:%s193]
    %s195 = scalar_lea.vmem %s0, 10
    %s196 = smov 12
    %v197 = vld [vmem:[%s195] ss:$16 sm:%s196]
    %vm198 = vcmask 1043458
    %v199 = vsel %vm198, %v197, %v194
    %s200 = scalar_lea.vmem %s0, 10
    %s201 = smov 48
    %v202 = vld [vmem:[%s200] ss:$16 sm:%s201]
    %vm203 = vcmask 1045508
    %v204 = vsel %vm203, %v202, %v199
    %s205 = scalar_lea.vmem %s0, 10
    %s206 = smov 192
    %v207 = vld [vmem:[%s205] ss:$16 sm:%s206]
    %vm208 = vcmask 1047558
    %v209 = vsel %vm208, %v207, %v204
    %210 = vrot.lane.b32.xlu0 %v209, 40
    %v211 = vpop.permute.xlu0 %210
    %vm212 = vcmask 359744
    %213 = vst.msk [vmem:[#allocation0] sm:$0x7] %vm212, %v211
    %s214 = scalar_lea.vmem [#allocation0], 5
    %215 = vst.msk [vmem:[%s214] sm:$0x38] %vm212, %v211
    %s216 = scalar_lea.vmem [#allocation0], 10
    %217 = vst.msk [vmem:[%s216] sm:$0xc0] %vm212, %v211
    %s218 = scalar_lea.vmem %s0, 138
    %v219 = vld [vmem:[%s218] sm:$0x1]
    %220 = vrot.lane.b32.xlu0 %v219, 40
    %v221 = vpop.permute.xlu0 %220
    %vm222 = vcmask 359744
    %s223 = scalar_lea.vmem [#allocation0], 18
    %224 = vst.msk [vmem:[%s223] sm:$0x1] %vm222, %v221
    %s225 = scalar_lea.vmem %s0, 9
    %s226 = smov 3
    %v227 = vld [vmem:[%s225] ss:$16 sm:%s226]
    %s228 = scalar_lea.vmem %s0, 9
    %s229 = smov 12
    %v230 = vld [vmem:[%s228] ss:$16 sm:%s229]
    %vm231 = vcmask 1043458
    %v232 = vsel %vm231, %v230, %v227
    %s233 = scalar_lea.vmem %s0, 9
    %s234 = smov 48
    %v235 = vld [vmem:[%s233] ss:$16 sm:%s234]
    %vm236 = vcmask 1045508
    %v237 = vsel %vm236, %v235, %v232
    %s238 = scalar_lea.vmem %s0, 9
    %s239 = smov 192
    %v240 = vld [vmem:[%s238] ss:$16 sm:%s239]
    %vm241 = vcmask 1047558
    %v242 = vsel %vm241, %v240, %v237
    %243 = vrot.lane.b32.xlu0 %v242, 36
    %v244 = vpop.permute.xlu0 %243
    %vm245 = vcmask 326944
    %246 = vst.msk [vmem:[#allocation0] sm:$0x7] %vm245, %v244
    %s247 = scalar_lea.vmem [#allocation0], 5
    %248 = vst.msk [vmem:[%s247] sm:$0x38] %vm245, %v244
    %s249 = scalar_lea.vmem [#allocation0], 10
    %250 = vst.msk [vmem:[%s249] sm:$0xc0] %vm245, %v244
    %s251 = scalar_lea.vmem %s0, 137
    %v252 = vld [vmem:[%s251] sm:$0x1]
    %253 = vrot.lane.b32.xlu0 %v252, 36
    %v254 = vpop.permute.xlu0 %253
    %vm255 = vcmask 326944
    %s256 = scalar_lea.vmem [#allocation0], 18
    %257 = vst.msk [vmem:[%s256] sm:$0x1] %vm255, %v254
    %s258 = scalar_lea.vmem %s0, 8
    %s259 = smov 3
    %v260 = vld [vmem:[%s258] ss:$16 sm:%s259]
    %s261 = scalar_lea.vmem %s0, 8
    %s262 = smov 12
    %v263 = vld [vmem:[%s261] ss:$16 sm:%s262]
    %vm264 = vcmask 1043458
    %v265 = vsel %vm264, %v263, %v260
    %s266 = scalar_lea.vmem %s0, 8
    %s267 = smov 48
    %v268 = vld [vmem:[%s266] ss:$16 sm:%s267]
    %vm269 = vcmask 1045508
    %v270 = vsel %vm269, %v268, %v265
    %s271 = scalar_lea.vmem %s0, 8
    %s272 = smov 192
    %v273 = vld [vmem:[%s271] ss:$16 sm:%s272]
    %vm274 = vcmask 1047558
    %v275 = vsel %vm274, %v273, %v270
    %276 = vrot.lane.b32.xlu0 %v275, 32
    %v277 = vpop.permute.xlu0 %276
    %vm278 = vcmask 294144
    %279 = vst.msk [vmem:[#allocation0] sm:$0x7] %vm278, %v277
    %s280 = scalar_lea.vmem [#allocation0], 5
    %281 = vst.msk [vmem:[%s280] sm:$0x38] %vm278, %v277
    %s282 = scalar_lea.vmem [#allocation0], 10
    %283 = vst.msk [vmem:[%s282] sm:$0xc0] %vm278, %v277
    %s284 = scalar_lea.vmem %s0, 136
    %v285 = vld [vmem:[%s284] sm:$0x1]
    %286 = vrot.lane.b32.xlu0 %v285, 32
    %v287 = vpop.permute.xlu0 %286
    %vm288 = vcmask 294144
    %s289 = scalar_lea.vmem [#allocation0], 18
    %290 = vst.msk [vmem:[%s289] sm:$0x1] %vm288, %v287
    %s291 = scalar_lea.vmem %s0, 7
    %s292 = smov 3
    %v293 = vld [vmem:[%s291] ss:$16 sm:%s292]
    %s294 = scalar_lea.vmem %s0, 7
    %s295 = smov 12
    %v296 = vld [vmem:[%s294] ss:$16 sm:%s295]
    %vm297 = vcmask 1043458
    %v298 = vsel %vm297, %v296, %v293
    %s299 = scalar_lea.vmem %s0, 7
    %s300 = smov 48
    %v301 = vld [vmem:[%s299] ss:$16 sm:%s300]
    %vm302 = vcmask 1045508
    %v303 = vsel %vm302, %v301, %v298
    %s304 = scalar_lea.vmem %s0, 7
    %s305 = smov 192
    %v306 = vld [vmem:[%s304] ss:$16 sm:%s305]
    %vm307 = vcmask 1047558
    %v308 = vsel %vm307, %v306, %v303
    %309 = vrot.lane.b32.xlu0 %v308, 28
    %v310 = vpop.permute.xlu0 %309
    %vm311 = vcmask 261344
    %312 = vst.msk [vmem:[#allocation0] sm:$0x7] %vm311, %v310
    %s313 = scalar_lea.vmem [#allocation0], 5
    %314 = vst.msk [vmem:[%s313] sm:$0x38] %vm311, %v310
    %s315 = scalar_lea.vmem [#allocation0], 10
    %316 = vst.msk [vmem:[%s315] sm:$0xc0] %vm311, %v310
    %s317 = scalar_lea.vmem %s0, 135
    %v318 = vld [vmem:[%s317] sm:$0x1]
    %319 = vrot.lane.b32.xlu0 %v318, 28
    %v320 = vpop.permute.xlu0 %319
    %vm321 = vcmask 261344
    %s322 = scalar_lea.vmem [#allocation0], 18
    %323 = vst.msk [vmem:[%s322] sm:$0x1] %vm321, %v320
    %s324 = scalar_lea.vmem %s0, 6
    %s325 = smov 3
    %v326 = vld [vmem:[%s324] ss:$16 sm:%s325]
    %s327 = scalar_lea.vmem %s0, 6
    %s328 = smov 12
    %v329 = vld [vmem:[%s327] ss:$16 sm:%s328]
    %vm330 = vcmask 1043458
    %v331 = vsel %vm330, %v329, %v326
    %s332 = scalar_lea.vmem %s0, 6
    %s333 = smov 48
    %v334 = vld [vmem:[%s332] ss:$16 sm:%s333]
    %vm335 = vcmask 1045508
    %v336 = vsel %vm335, %v334, %v331
    %s337 = scalar_lea.vmem %s0, 6
    %s338 = smov 192
    %v339 = vld [vmem:[%s337] ss:$16 sm:%s338]
    %vm340 = vcmask 1047558
    %v341 = vsel %vm340, %v339, %v336
    %342 = vrot.lane.b32.xlu0 %v341, 24
    %v343 = vpop.permute.xlu0 %342
    %vm344 = vcmask 228544
    %345 = vst.msk [vmem:[#allocation0] sm:$0x7] %vm344, %v343
    %s346 = scalar_lea.vmem [#allocation0], 5
    %347 = vst.msk [vmem:[%s346] sm:$0x38] %vm344, %v343
    %s348 = scalar_lea.vmem [#allocation0], 10
    %349 = vst.msk [vmem:[%s348] sm:$0xc0] %vm344, %v343
    %s350 = scalar_lea.vmem %s0, 134
    %v351 = vld [vmem:[%s350] sm:$0x1]
    %352 = vrot.lane.b32.xlu0 %v351, 24
    %v353 = vpop.permute.xlu0 %352
    %vm354 = vcmask 228544
    %s355 = scalar_lea.vmem [#allocation0], 18
    %356 = vst.msk [vmem:[%s355] sm:$0x1] %vm354, %v353
    %s357 = scalar_lea.vmem %s0, 5
    %s358 = smov 3
    %v359 = vld [vmem:[%s357] ss:$16 sm:%s358]
    %s360 = scalar_lea.vmem %s0, 5
    %s361 = smov 12
    %v362 = vld [vmem:[%s360] ss:$16 sm:%s361]
    %vm363 = vcmask 1043458
    %v364 = vsel %vm363, %v362, %v359
    %s365 = scalar_lea.vmem %s0, 5
    %s366 = smov 48
    %v367 = vld [vmem:[%s365] ss:$16 sm:%s366]
    %vm368 = vcmask 1045508
    %v369 = vsel %vm368, %v367, %v364
    %s370 = scalar_lea.vmem %s0, 5
    %s371 = smov 192
    %v372 = vld [vmem:[%s370] ss:$16 sm:%s371]
    %vm373 = vcmask 1047558
    %v374 = vsel %vm373, %v372, %v369
    %375 = vrot.lane.b32.xlu0 %v374, 20
    %v376 = vpop.permute.xlu0 %375
    %vm377 = vcmask 195744
    %378 = vst.msk [vmem:[#allocation0] sm:$0x7] %vm377, %v376
    %s379 = scalar_lea.vmem [#allocation0], 5
    %380 = vst.msk [vmem:[%s379] sm:$0x38] %vm377, %v376
    %s381 = scalar_lea.vmem [#allocation0], 10
    %382 = vst.msk [vmem:[%s381] sm:$0xc0] %vm377, %v376
    %s383 = scalar_lea.vmem %s0, 133
    %v384 = vld [vmem:[%s383] sm:$0x1]
    %385 = vrot.lane.b32.xlu0 %v384, 20
    %v386 = vpop.permute.xlu0 %385
    %vm387 = vcmask 195744
    %s388 = scalar_lea.vmem [#allocation0], 18
    %389 = vst.msk [vmem:[%s388] sm:$0x1] %vm387, %v386
    %s390 = scalar_lea.vmem %s0, 4
    %s391 = smov 3
    %v392 = vld [vmem:[%s390] ss:$16 sm:%s391]
    %s393 = scalar_lea.vmem %s0, 4
    %s394 = smov 12
    %v395 = vld [vmem:[%s393] ss:$16 sm:%s394]
    %vm396 = vcmask 1043458
    %v397 = vsel %vm396, %v395, %v392
    %s398 = scalar_lea.vmem %s0, 4
    %s399 = smov 48
    %v400 = vld [vmem:[%s398] ss:$16 sm:%s399]
    %vm401 = vcmask 1045508
    %v402 = vsel %vm401, %v400, %v397
    %s403 = scalar_lea.vmem %s0, 4
    %s404 = smov 192
    %v405 = vld [vmem:[%s403] ss:$16 sm:%s404]
    %vm406 = vcmask 1047558
    %v407 = vsel %vm406, %v405, %v402
    %408 = vrot.lane.b32.xlu0 %v407, 16
    %v409 = vpop.permute.xlu0 %408
    %vm410 = vcmask 162944
    %411 = vst.msk [vmem:[#allocation0] sm:$0x7] %vm410, %v409
    %s412 = scalar_lea.vmem [#allocation0], 5
    %413 = vst.msk [vmem:[%s412] sm:$0x38] %vm410, %v409
    %s414 = scalar_lea.vmem [#allocation0], 10
    %415 = vst.msk [vmem:[%s414] sm:$0xc0] %vm410, %v409
    %s416 = scalar_lea.vmem %s0, 132
    %v417 = vld [vmem:[%s416] sm:$0x1]
    %418 = vrot.lane.b32.xlu0 %v417, 16
    %v419 = vpop.permute.xlu0 %418
    %vm420 = vcmask 162944
    %s421 = scalar_lea.vmem [#allocation0], 18
    %422 = vst.msk [vmem:[%s421] sm:$0x1] %vm420, %v419
    %s423 = scalar_lea.vmem %s0, 3
    %s424 = smov 3
    %v425 = vld [vmem:[%s423] ss:$16 sm:%s424]
    %s426 = scalar_lea.vmem %s0, 3
    %s427 = smov 12
    %v428 = vld [vmem:[%s426] ss:$16 sm:%s427]
    %vm429 = vcmask 1043458
    %v430 = vsel %vm429, %v428, %v425
    %s431 = scalar_lea.vmem %s0, 3
    %s432 = smov 48
    %v433 = vld [vmem:[%s431] ss:$16 sm:%s432]
    %vm434 = vcmask 1045508
    %v435 = vsel %vm434, %v433, %v430
    %s436 = scalar_lea.vmem %s0, 3
    %s437 = smov 192
    %v438 = vld [vmem:[%s436] ss:$16 sm:%s437]
    %vm439 = vcmask 1047558
    %v440 = vsel %vm439, %v438, %v435
    %441 = vrot.lane.b32.xlu0 %v440, 12
    %v442 = vpop.permute.xlu0 %441
    %vm443 = vcmask 130144
    %444 = vst.msk [vmem:[#allocation0] sm:$0x7] %vm443, %v442
    %s445 = scalar_lea.vmem [#allocation0], 5
    %446 = vst.msk [vmem:[%s445] sm:$0x38] %vm443, %v442
    %s447 = scalar_lea.vmem [#allocation0], 10
    %448 = vst.msk [vmem:[%s447] sm:$0xc0] %vm443, %v442
    %s449 = scalar_lea.vmem %s0, 131
    %v450 = vld [vmem:[%s449] sm:$0x1]
    %451 = vrot.lane.b32.xlu0 %v450, 12
    %v452 = vpop.permute.xlu0 %451
    %vm453 = vcmask 130144
    %s454 = scalar_lea.vmem [#allocation0], 18
    %455 = vst.msk [vmem:[%s454] sm:$0x1] %vm453, %v452
    %s456 = scalar_lea.vmem %s0, 2
    %s457 = smov 3
    %v458 = vld [vmem:[%s456] ss:$16 sm:%s457]
    %s459 = scalar_lea.vmem %s0, 2
    %s460 = smov 12
    %v461 = vld [vmem:[%s459] ss:$16 sm:%s460]
    %vm462 = vcmask 1043458
    %v463 = vsel %vm462, %v461, %v458
    %s464 = scalar_lea.vmem %s0, 2
    %s465 = smov 48
    %v466 = vld [vmem:[%s464] ss:$16 sm:%s465]
    %vm467 = vcmask 1045508
    %v468 = vsel %vm467, %v466, %v463
    %s469 = scalar_lea.vmem %s0, 2
    %s470 = smov 192
    %v471 = vld [vmem:[%s469] ss:$16 sm:%s470]
    %vm472 = vcmask 1047558
    %v473 = vsel %vm472, %v471, %v468
    %474 = vrot.lane.b32.xlu0 %v473, 8
    %v475 = vpop.permute.xlu0 %474
    %vm476 = vcmask 97344
    %477 = vst.msk [vmem:[#allocation0] sm:$0x7] %vm476, %v475
    %s478 = scalar_lea.vmem [#allocation0], 5
    %479 = vst.msk [vmem:[%s478] sm:$0x38] %vm476, %v475
    %s480 = scalar_lea.vmem [#allocation0], 10
    %481 = vst.msk [vmem:[%s480] sm:$0xc0] %vm476, %v475
    %s482 = scalar_lea.vmem %s0, 130
    %v483 = vld [vmem:[%s482] sm:$0x1]
    %484 = vrot.lane.b32.xlu0 %v483, 8
    %v485 = vpop.permute.xlu0 %484
    %vm486 = vcmask 97344
    %s487 = scalar_lea.vmem [#allocation0], 18
    %488 = vst.msk [vmem:[%s487] sm:$0x1] %vm486, %v485
    %s489 = scalar_lea.vmem %s0, 1
    %s490 = smov 3
    %v491 = vld [vmem:[%s489] ss:$16 sm:%s490]
    %s492 = scalar_lea.vmem %s0, 1
    %s493 = smov 12
    %v494 = vld [vmem:[%s492] ss:$16 sm:%s493]
    %vm495 = vcmask 1043458
    %v496 = vsel %vm495, %v494, %v491
    %s497 = scalar_lea.vmem %s0, 1
    %s498 = smov 48
    %v499 = vld [vmem:[%s497] ss:$16 sm:%s498]
    %vm500 = vcmask 1045508
    %v501 = vsel %vm500, %v499, %v496
    %s502 = scalar_lea.vmem %s0, 1
    %s503 = smov 192
    %v504 = vld [vmem:[%s502] ss:$16 sm:%s503]
    %vm505 = vcmask 1047558
    %v506 = vsel %vm505, %v504, %v501
    %507 = vrot.lane.b32.xlu0 %v506, 4
    %v508 = vpop.permute.xlu0 %507
    %vm509 = vcmask 64544
    %510 = vst.msk [vmem:[#allocation0] sm:$0x7] %vm509, %v508
    %s511 = scalar_lea.vmem [#allocation0], 5
    %512 = vst.msk [vmem:[%s511] sm:$0x38] %vm509, %v508
    %s513 = scalar_lea.vmem [#allocation0], 10
    %514 = vst.msk [vmem:[%s513] sm:$0xc0] %vm509, %v508
    %s515 = scalar_lea.vmem %s0, 129
    %v516 = vld [vmem:[%s515] sm:$0x1]
    %517 = vrot.lane.b32.xlu0 %v516, 4
    %v518 = vpop.permute.xlu0 %517
    %vm519 = vcmask 64544
    %s520 = scalar_lea.vmem [#allocation0], 18
    %521 = vst.msk [vmem:[%s520] sm:$0x1] %vm519, %v518
    %s523 = sshll.u32 1, 4
    %s524 = ssub.s32 %s523, 1
    %v526 = vld [vmem:[#allocation0] sm:%s524]
    %s527 = sshll.u32 1, 4
    %s528 = ssub.s32 %s527, 1
    %529 = vst [vmem:[%s1] sm:%s528] %v526
    %s530 = scalar_lea.vmem [#allocation0], 8
    %v531 = vld [vmem:[%s530] sm:%s524]
    %s532 = sshll.u32 1, 4
    %s533 = ssub.s32 %s532, 1
    %s534 = scalar_lea.vmem %s1, 4
    %535 = vst [vmem:[%s534] sm:%s533] %v531
    %s536 = scalar_lea.vmem [#allocation0], 16
    %v537 = vld [vmem:[%s536] sm:%s524]
    %s538 = sshll.u32 1, 4
    %s539 = ssub.s32 %s538, 1
    %s540 = smul.addr 4, 2
    %s541 = scalar_lea.vmem %s1, %s540
    %542 = vst [vmem:[%s541] sm:%s539] %v537

// kernel: double_conv_forward.1
$region0: #{double_conv_forward.1}
  #allocation0 [shape = 'u32[]', space=smem, size = 0x4, offset = 0x4, fixed_abs, tag = 'smem constant byte address 0x4 - core index']
  #allocation1 [shape = 'u32[144,128]{1,0:T(1,128)}', space=vmem, size = 0x12000, scoped, tag = 'internal scratch']
  %s0 = inlined_call_operand.vmem [shape: f32[2,20,72], index: 0, kind: input, shape index: {}]
  %s1 = inlined_call_operand.vmem [shape: f32[3,3,64], index: 1, kind: input, shape index: {}]
  %s2 = inlined_call_operand.vmem [shape: bf16[64,144], index: 2, kind: input, shape index: {}]
  %s3 = inlined_call_operand.vmem [shape: f32[1,144], index: 3, kind: input, shape index: {}]
  %s4 = inlined_call_operand.vmem [shape: f32[3,3,128], index: 4, kind: input, shape index: {}]
  %s5 = inlined_call_operand.vmem [shape: bf16[128,128], index: 5, kind: input, shape index: {}]
  %s6 = inlined_call_operand.vmem [shape: f32[1,128], index: 6, kind: input, shape index: {}]
  %s7 = inlined_call_operand.vmem [shape: f32[2,16,128], index: 7, kind: output, shape index: {}]
  %s8 = sld [smem:[#allocation0]]
  $region61: #{double_conv_forward.1} parent=0
    _
  %s10 = ssub.s32 1, %s8
  %s11 = scalar_select 0, %s10, %s8
  loop: start=0, step=1, limit=4
  $region2: #{double_conv_forward.1} parent=0 // loop_pre_header
    _
  $region3: #{double_conv_forward.1} parent=0 // loop_header
    %s13 = sphi 0, %s17
    %p14 = scmp.ge.s32.totalorder %s13, 4
    %s23 = sphi 0, %s25
    %s26 = sphi 0, %s23
    %s27 = sphi 0, %s26
    %s43 = sphi 0, %s27
    %s47 = sphi 0, %s47
    %s49 = sphi 0, %s47
    %s50 = sphi 0, %s49
    %s64 = sphi 0, %s50
    %s68 = sphi 0, %s68
    %s70 = sphi 0, %s68
    %s71 = sphi 0, %s70
    %s85 = sphi 0, %s71
    %s89 = sphi 0, %s89
    %s91 = sphi 0, %s89
    %s92 = sphi 0, %s91
    %s106 = sphi 0, %s92
    %s110 = sphi 0, %s110
    %s112 = sphi 0, %s110
    %s113 = sphi 0, %s112
    %s127 = sphi 0, %s113
    %s131 = sphi 0, %s131
    %s133 = sphi 0, %s131
    %s134 = sphi 0, %s133
    %s148 = sphi 0, %s134
    %s152 = sphi 0, %s152
    %s154 = sphi 0, %s152
    %s155 = sphi 0, %s154
    %s169 = sphi 0, %s155
    %s175 = sphi 0, %s177
    %s178 = sphi 0, %s175
    %s179 = sphi 0, %s178
    %s195 = sphi 0, %s179
  $region4: #{double_conv_forward.1} parent=0 // loop_header_branch
    %16 = sbr.rel (%p14) target = $region8
  $region5: #{double_conv_forward.1} parent=0 // loop_body
    %s18 = ssub.s32 %s13, 1
    %s19 = ssub.s32 %s13, 2
    %s20 = sadd.s32 %s13, 1
    %s21 = ssub.s32 %s13, %s20
    %p22 = scmp.eq.s32.totalorder %s21, 0
    %s24 = sadd.s32 %s23, 1
    %s25 = scalar_select %p22, %s23, %s24
    %p28 = pneg %p22
    %p29 = scmp.eq.s32.totalorder %s13, 1
    %p30 = por %p28, %p29
    %p31 = scmp.ne.s32.totalorder %s23, %s26
    %p32 = scmp.eq.s32.totalorder %s13, 0
    %p33 = por %p31, %p32
    %p34 = scmp.ne.s32.totalorder %s23, %s26
    %p35 = scmp.eq.s32.totalorder %s18, 1
    %p36 = por %p34, %p35
    %p37 = scmp.ne.s32.totalorder %s26, %s27
    %p38 = scmp.eq.s32.totalorder %s18, 0
    %p39 = por %p37, %p38
    %p40 = scmp.ne.s32.totalorder %s26, %s27
    %p41 = scmp.eq.s32.totalorder %s19, 1
    %p42 = por %p40, %p41
    %p44 = scmp.ne.s32.totalorder %s27, %s43
    %p45 = scmp.eq.s32.totalorder %s19, 0
    %p46 = por %p44, %p45
    %s48 = sadd.s32 %s47, 1
    %p51 = scmp.eq.s32.totalorder %s13, 1
    %p52 = scmp.ne.s32.totalorder %s47, %s49
    %p53 = scmp.eq.s32.totalorder %s13, 0
    %p54 = por %p52, %p53
    %p55 = scmp.ne.s32.totalorder %s47, %s49
    %p56 = scmp.eq.s32.totalorder %s18, 1
    %p57 = por %p55, %p56
    %p58 = scmp.ne.s32.totalorder %s49, %s50
    %p59 = scmp.eq.s32.totalorder %s18, 0
    %p60 = por %p58, %p59
    %p61 = scmp.ne.s32.totalorder %s49, %s50
    %p62 = scmp.eq.s32.totalorder %s19, 1
    %p63 = por %p61, %p62
    %p65 = scmp.ne.s32.totalorder %s50, %s64
    %p66 = scmp.eq.s32.totalorder %s19, 0
    %p67 = por %p65, %p66
    %s69 = sadd.s32 %s68, 1
    %p72 = scmp.eq.s32.totalorder %s13, 1
    %p73 = scmp.ne.s32.totalorder %s68, %s70
    %p74 = scmp.eq.s32.totalorder %s13, 0
    %p75 = por %p73, %p74
    %p76 = scmp.ne.s32.totalorder %s68, %s70
    %p77 = scmp.eq.s32.totalorder %s18, 1
    %p78 = por %p76, %p77
    %p79 = scmp.ne.s32.totalorder %s70, %s71
    %p80 = scmp.eq.s32.totalorder %s18, 0
    %p81 = por %p79, %p80
    %p82 = scmp.ne.s32.totalorder %s70, %s71
    %p83 = scmp.eq.s32.totalorder %s19, 1
    %p84 = por %p82, %p83
    %p86 = scmp.ne.s32.totalorder %s71, %s85
    %p87 = scmp.eq.s32.totalorder %s19, 0
    %p88 = por %p86, %p87
    %s90 = sadd.s32 %s89, 1
    %p93 = scmp.eq.s32.totalorder %s13, 1
    %p94 = scmp.ne.s32.totalorder %s89, %s91
    %p95 = scmp.eq.s32.totalorder %s13, 0
    %p96 = por %p94, %p95
    %p97 = scmp.ne.s32.totalorder %s89, %s91
    %p98 = scmp.eq.s32.totalorder %s18, 1
    %p99 = por %p97, %p98
    %p100 = scmp.ne.s32.totalorder %s91, %s92
    %p101 = scmp.eq.s32.totalorder %s18, 0
    %p102 = por %p100, %p101
    %p103 = scmp.ne.s32.totalorder %s91, %s92
    %p104 = scmp.eq.s32.totalorder %s19, 1
    %p105 = por %p103, %p104
    %p107 = scmp.ne.s32.totalorder %s92, %s106
    %p108 = scmp.eq.s32.totalorder %s19, 0
    %p109 = por %p107, %p108
    %s111 = sadd.s32 %s110, 1
    %p114 = scmp.eq.s32.totalorder %s13, 1
    %p115 = scmp.ne.s32.totalorder %s110, %s112
    %p116 = scmp.eq.s32.totalorder %s13, 0
    %p117 = por %p115, %p116
    %p118 = scmp.ne.s32.totalorder %s110, %s112
    %p119 = scmp.eq.s32.totalorder %s18, 1
    %p120 = por %p118, %p119
    %p121 = scmp.ne.s32.totalorder %s112, %s113
    %p122 = scmp.eq.s32.totalorder %s18, 0
    %p123 = por %p121, %p122
    %p124 = scmp.ne.s32.totalorder %s112, %s113
    %p125 = scmp.eq.s32.totalorder %s19, 1
    %p126 = por %p124, %p125
    %p128 = scmp.ne.s32.totalorder %s113, %s127
    %p129 = scmp.eq.s32.totalorder %s19, 0
    %p130 = por %p128, %p129
    %s132 = sadd.s32 %s131, 1
    %p135 = scmp.eq.s32.totalorder %s13, 1
    %p136 = scmp.ne.s32.totalorder %s131, %s133
    %p137 = scmp.eq.s32.totalorder %s13, 0
    %p138 = por %p136, %p137
    %p139 = scmp.ne.s32.totalorder %s131, %s133
    %p140 = scmp.eq.s32.totalorder %s18, 1
    %p141 = por %p139, %p140
    %p142 = scmp.ne.s32.totalorder %s133, %s134
    %p143 = scmp.eq.s32.totalorder %s18, 0
    %p144 = por %p142, %p143
    %p145 = scmp.ne.s32.totalorder %s133, %s134
    %p146 = scmp.eq.s32.totalorder %s19, 1
    %p147 = por %p145, %p146
    %p149 = scmp.ne.s32.totalorder %s134, %s148
    %p150 = scmp.eq.s32.totalorder %s19, 0
    %p151 = por %p149, %p150
    %s153 = sadd.s32 %s152, 1
    %p156 = scmp.eq.s32.totalorder %s13, 1
    %p157 = scmp.ne.s32.totalorder %s152, %s154
    %p158 = scmp.eq.s32.totalorder %s13, 0
    %p159 = por %p157, %p158
    %p160 = scmp.ne.s32.totalorder %s152, %s154
    %p161 = scmp.eq.s32.totalorder %s18, 1
    %p162 = por %p160, %p161
    %p163 = scmp.ne.s32.totalorder %s154, %s155
    %p164 = scmp.eq.s32.totalorder %s18, 0
    %p165 = por %p163, %p164
    %p166 = scmp.ne.s32.totalorder %s154, %s155
    %p167 = scmp.eq.s32.totalorder %s19, 1
    %p168 = por %p166, %p167
    %p170 = scmp.ne.s32.totalorder %s155, %s169
    %p171 = scmp.eq.s32.totalorder %s19, 0
    %p172 = por %p170, %p171
    %s173 = ssub.s32 %s13, %s20
    %p174 = scmp.eq.s32.totalorder %s173, 0
    %s176 = sadd.s32 %s175, 1
    %s177 = scalar_select %p174, %s175, %s176
    %p180 = pneg %p174
    %p181 = scmp.eq.s32.totalorder %s13, 1
    %p182 = por %p180, %p181
    %p183 = scmp.ne.s32.totalorder %s175, %s178
    %p184 = scmp.eq.s32.totalorder %s13, 0
    %p185 = por %p183, %p184
    %p186 = scmp.ne.s32.totalorder %s175, %s178
    %p187 = scmp.eq.s32.totalorder %s18, 1
    %p188 = por %p186, %p187
    %p189 = scmp.ne.s32.totalorder %s178, %s179
    %p190 = scmp.eq.s32.totalorder %s18, 0
    %p191 = por %p189, %p190
    %p192 = scmp.ne.s32.totalorder %s178, %s179
    %p193 = scmp.eq.s32.totalorder %s19, 1
    %p194 = por %p192, %p193
    %p196 = scmp.ne.s32.totalorder %s179, %s195
    %p197 = scmp.eq.s32.totalorder %s19, 0
    %p198 = por %p196, %p197
    %p199 = scmp.le.s32.totalorder 1, %s13
    %p200 = scmp.lt.s32.totalorder %s13, 3
    %p201 = pnand %p199, %p200
    %p202 = pneg %p201
    // Predicated region
    $region9: #{double_conv_forward.1} parent=5 // pred_check
      _
    $region10: #{double_conv_forward.1} parent=5 // pred_check_branch
      %204 = sbr.rel (%p201) target = $region12
    $region11: #{double_conv_forward.1} parent=5 // pred_region
      %s205 = ssub.s32 %s13, 1
      // Predicated region
      $region13: #{double_conv_forward.1} parent=11 // pred_check
        %p206 = pneg %p60
      $region14: #{double_conv_forward.1} parent=11 // pred_check_branch
        %208 = sbr.rel (%p206) target = $region16
      $region15: #{double_conv_forward.1} parent=11 // pred_region
        _
      $region16: #{double_conv_forward.1} parent=11 // pred_fallthru
        _
      // Predicated region
      $region17: #{double_conv_forward.1} parent=11 // pred_check
        %p209 = pneg %p81
      $region18: #{double_conv_forward.1} parent=11 // pred_check_branch
        %211 = sbr.rel (%p209) target = $region20
      $region19: #{double_conv_forward.1} parent=11 // pred_region
        _
      $region20: #{double_conv_forward.1} parent=11 // pred_fallthru
        _
      // Predicated region
      $region21: #{double_conv_forward.1} parent=11 // pred_check
        %p212 = pneg %p102
      $region22: #{double_conv_forward.1} parent=11 // pred_check_branch
        %214 = sbr.rel (%p212) target = $region24
      $region23: #{double_conv_forward.1} parent=11 // pred_region
        _
      $region24: #{double_conv_forward.1} parent=11 // pred_fallthru
        _
      // Predicated region
      $region25: #{double_conv_forward.1} parent=11 // pred_check
        %p215 = pneg %p123
      $region26: #{double_conv_forward.1} parent=11 // pred_check_branch
        %217 = sbr.rel (%p215) target = $region28
      $region27: #{double_conv_forward.1} parent=11 // pred_region
        _
      $region28: #{double_conv_forward.1} parent=11 // pred_fallthru
        _
      // Predicated region
      $region29: #{double_conv_forward.1} parent=11 // pred_check
        %p218 = pneg %p144
      $region30: #{double_conv_forward.1} parent=11 // pred_check_branch
        %220 = sbr.rel (%p218) target = $region32
      $region31: #{double_conv_forward.1} parent=11 // pred_region
        _
      $region32: #{double_conv_forward.1} parent=11 // pred_fallthru
        _
      // Predicated region
      $region33: #{double_conv_forward.1} parent=11 // pred_check
        %p221 = pneg %p165
      $region34: #{double_conv_forward.1} parent=11 // pred_check_branch
        %223 = sbr.rel (%p221) target = $region36
      $region35: #{double_conv_forward.1} parent=11 // pred_region
        _
      $region36: #{double_conv_forward.1} parent=11 // pred_fallthru
        _
    $region12: #{double_conv_forward.1} parent=5 // pred_fallthru
      _
    %p224 = scmp.lt.s32.totalorder %s13, 2
    // Predicated region
    $region37: #{double_conv_forward.1} parent=5 // pred_check
      %p225 = pneg %p224
    $region38: #{double_conv_forward.1} parent=5 // pred_check_branch
      %227 = sbr.rel (%p225) target = $region40
    $region39: #{double_conv_forward.1} parent=5 // pred_region
      // Predicated region
      $region41: #{double_conv_forward.1} parent=39 // pred_check
        %p228 = pneg %p33
      $region42: #{double_conv_forward.1} parent=39 // pred_check_branch
        %230 = sbr.rel (%p228) target = $region44
      $region43: #{double_conv_forward.1} parent=39 // pred_region
        %p231 = scmp.lt.s32.totalorder %s13, 1
        %s232 = scalar_select %p231, %s13, 1
        %s233 = smul.addr %s232, 3
        %s234 = smul.addr %s233, 8
        %s235 = scalar_lea.vmem %s0, %s234
      $region44: #{double_conv_forward.1} parent=39 // pred_fallthru
        _
    $region40: #{double_conv_forward.1} parent=5 // pred_fallthru
      _
    %p236 = scmp.le.s32.totalorder 1, %s13
    %p237 = scmp.lt.s32.totalorder %s13, 3
    %p238 = pnand %p236, %p237
    %p239 = pneg %p238
    // Predicated region
    $region45: #{double_conv_forward.1} parent=5 // pred_check
      _
    $region46: #{double_conv_forward.1} parent=5 // pred_check_branch
      %241 = sbr.rel (%p238) target = $region48
    $region47: #{double_conv_forward.1} parent=5 // pred_region
      %s242 = ssub.s32 %s13, 1
      %p243 = scmp.lt.s32.totalorder %s18, 1
      %s244 = scalar_select %p243, %s18, 1
      %s245 = smul.addr %s244, 3
      %s246 = smul.addr %s245, 8
      %s247 = scalar_lea.vmem %s0, %s246
      %p248 = pneg %p39
      %p249 = pneg %p36
      %p250 = pneg %p60
      %p251 = pneg %p57
      %p252 = pneg %p81
      %p253 = pneg %p78
      %p254 = pneg %p102
      %p255 = pneg %p99
      %p256 = pneg %p123
      %p257 = pneg %p120
      %p258 = pneg %p144
      %p259 = pneg %p141
      %p260 = pneg %p165
      %p261 = pneg %p162
      %p262 = pneg %p191
      %p263 = pneg %p188
      %p264 = scmp.lt.s32.totalorder %s18, 1
      %s265 = scalar_select %p264, %s18, 1
      %s266 = smul.addr %s265, 2
      %s267 = smul.addr %s266, 8
      %s268 = scalar_lea.vmem %s7, %s267
      %p269 = scmp.lt.s32.totalorder %s18, 1
      %s270 = scalar_select %p269, %s18, 1
      %s271 = smul.addr %s270, 3
      %s272 = smul.addr %s271, 8
      %s273 = scalar_lea.vmem %s0, %s272
      %p274 = scmp.lt.s32.totalorder %s18, 1
      %s275 = scalar_select %p274, %s18, 1
      %s276 = smul.addr %s275, 2
      %s277 = smul.addr %s276, 8
      %s278 = scalar_lea.vmem %s7, %s277
      %v280 = vld [vmem:[%s273] sm:$0xff]
      %v281 = vld [vmem:[%s273 + $0x8] sm:$0xff]
      %v282 = vld [vmem:[%s273 + $0x10] sm:$0xf]
      %s283 = scalar_lea.vmem %s1, 4
      %v284 = vld [vmem:[%s283 + $0x1] sm:$0x1]
      %v285 = vlaneseq
      %v286 = vshrl.u32 %v285, 7
      %v287 = vsub.s32 0, %v286
      %v288 = vrot.slane %v284, %v287
      %290 = vrot.lane.b32.xlu0 %v288, 4
      %v291 = vpop.permute.xlu0 %290
      %v293 = vmul.f32 %v280, %v291
      %v294 = vmul.f32 %v281, %v291
      %v295 = vmul.f32 %v282, %v291
      %v296 = vld [vmem:[%s1] sm:$0x1]
      %v297 = vlaneseq
      %v298 = vshrl.u32 %v297, 7
      %v299 = vsub.s32 0, %v298
      %v300 = vrot.slane %v296, %v299
      %v301 = vmul.f32 %v280, %v300
      %v302 = vmul.f32 %v281, %v300
      %v303 = vmul.f32 %v282, %v300
      %vm307 = vcmask 1040384
      %v308 = vrot.slane %v301, 7
      %v309 = vrot.slane %v302, 7
      %v310 = vsel %vm307, %v308, %v309
      %v311 = vrot.slane %v303, 7
      %v312 = vsel %vm307, %v309, %v311
      %313 = vrot.lane.b32.xlu0 %v308, 4
      %v314 = vpop.permute.xlu0 %313
      %315 = vrot.lane.b32.xlu0 %v310, 4
      %v316 = vpop.permute.xlu0 %315
      %317 = vrot.lane.b32.xlu0 %v312, 4
      %v318 = vpop.permute.xlu0 %317
      %v322 = vadd.f32 %v293, %v314
      %v323 = vadd.f32 %v294, %v316
      %v324 = vadd.f32 %v295, %v318
      %v325 = vld [vmem:[%s1 + $0x1] sm:$0x1]
      %v326 = vlaneseq
      %v327 = vshrl.u32 %v326, 7
      %v328 = vsub.s32 0, %v327
      %v329 = vrot.slane %v325, %v328
      %331 = vrot.lane.b32.xlu0 %v329, 4
      %v332 = vpop.permute.xlu0 %331
      %v334 = vmul.f32 %v280, %v332
      %v335 = vmul.f32 %v281, %v332
      %v336 = vmul.f32 %v282, %v332
      %v340 = vrot.slane %v334, 7
      %v341 = vrot.slane %v335, 7
      %v342 = vsel %vm307, %v340, %v341
      %v343 = vrot.slane %v336, 7
      %v344 = vsel %vm307, %v341, %v343
      %v348 = vadd.f32 %v322, %v340
      %v349 = vadd.f32 %v323, %v342
      %v350 = vadd.f32 %v324, %v344
      %v351 = vld [vmem:[%s1 + $0x2] sm:$0x1]
      %v352 = vlaneseq
      %v353 = vshrl.u32 %v352, 7
      %v354 = vsub.s32 0, %v353
      %v355 = vrot.slane %v351, %v354
      %357 = vrot.lane.b32.xlu0 %v355, 8
      %v358 = vpop.permute.xlu0 %357
      %v360 = vmul.f32 %v280, %v358
      %v361 = vmul.f32 %v281, %v358
      %v362 = vmul.f32 %v282, %v358
      %v366 = vrot.slane %v360, 7
      %v367 = vrot.slane %v361, 7
      %v368 = vsel %vm307, %v366, %v367
      %v369 = vrot.slane %v362, 7
      %v370 = vsel %vm307, %v367, %v369
      %371 = vrot.lane.b32.xlu0 %v366, 124
      %v372 = vpop.permute.xlu0 %371
      %373 = vrot.lane.b32.xlu0 %v368, 124
      %v374 = vpop.permute.xlu0 %373
      %375 = vrot.lane.b32.xlu0 %v370, 124
      %v376 = vpop.permute.xlu0 %375
      %v380 = vadd.f32 %v348, %v372
      %v381 = vadd.f32 %v349, %v374
      %v382 = vadd.f32 %v350, %v376
      %v383 = vld [vmem:[%s283] sm:$0x1]
      %v384 = vlaneseq
      %v385 = vshrl.u32 %v384, 7
      %v386 = vsub.s32 0, %v385
      %v387 = vrot.slane %v383, %v386
      %v388 = vmul.f32 %v280, %v387
      %v389 = vmul.f32 %v281, %v387
      %v390 = vmul.f32 %v282, %v387
      %394 = vrot.lane.b32.xlu0 %v388, 4
      %v395 = vpop.permute.xlu0 %394
      %396 = vrot.lane.b32.xlu0 %v389, 4
      %v397 = vpop.permute.xlu0 %396
      %398 = vrot.lane.b32.xlu0 %v390, 4
      %v399 = vpop.permute.xlu0 %398
      %v403 = vadd.f32 %v380, %v395
      %v404 = vadd.f32 %v381, %v397
      %v405 = vadd.f32 %v382, %v399
      %v406 = vld [vmem:[%s283 + $0x2] sm:$0x1]
      %v407 = vlaneseq
      %v408 = vshrl.u32 %v407, 7
      %v409 = vsub.s32 0, %v408
      %v410 = vrot.slane %v406, %v409
      %412 = vrot.lane.b32.xlu0 %v410, 8
      %v413 = vpop.permute.xlu0 %412
      %v415 = vmul.f32 %v280, %v413
      %v416 = vmul.f32 %v281, %v413
      %v417 = vmul.f32 %v282, %v413
      %421 = vrot.lane.b32.xlu0 %v415, 124
      %v422 = vpop.permute.xlu0 %421
      %423 = vrot.lane.b32.xlu0 %v416, 124
      %v424 = vpop.permute.xlu0 %423
      %425 = vrot.lane.b32.xlu0 %v417, 124
      %v426 = vpop.permute.xlu0 %425
      %v430 = vadd.f32 %v403, %v422
      %v431 = vadd.f32 %v404, %v424
      %v432 = vadd.f32 %v405, %v426
      %s433 = scalar_lea.vmem %s1, 8
      %v434 = vld [vmem:[%s433] sm:$0x1]
      %v435 = vlaneseq
      %v436 = vshrl.u32 %v435, 7
      %v437 = vsub.s32 0, %v436
      %v438 = vrot.slane %v434, %v437
      %v439 = vmul.f32 %v280, %v438
      %v440 = vmul.f32 %v281, %v438
      %v441 = vmul.f32 %v282, %v438
      %vm445 = vcmask 1046528
      %v446 = vrot.slane %v439, 1
      %v447 = vrot.slane %v440, 1
      %v448 = vsel %vm445, %v446, %v447
      %v449 = vrot.slane %v441, 1
      %v450 = vsel %vm445, %v447, %v449
      %451 = vrot.lane.b32.xlu0 %v448, 4
      %v452 = vpop.permute.xlu0 %451
      %453 = vrot.lane.b32.xlu0 %v450, 4
      %v454 = vpop.permute.xlu0 %453
      %455 = vrot.lane.b32.xlu0 %v449, 4
      %v456 = vpop.permute.xlu0 %455
      %v460 = vadd.f32 %v430, %v452
      %v461 = vadd.f32 %v431, %v454
      %v462 = vadd.f32 %v432, %v456
      %v463 = vld [vmem:[%s433 + $0x1] sm:$0x1]
      %v464 = vlaneseq
      %v465 = vshrl.u32 %v464, 7
      %v466 = vsub.s32 0, %v465
      %v467 = vrot.slane %v463, %v466
      %469 = vrot.lane.b32.xlu0 %v467, 4
      %v470 = vpop.permute.xlu0 %469
      %v472 = vmul.f32 %v280, %v470
      %v473 = vmul.f32 %v281, %v470
      %v474 = vmul.f32 %v282, %v470
      %v478 = vrot.slane %v472, 1
      %v479 = vrot.slane %v473, 1
      %v480 = vsel %vm445, %v478, %v479
      %v481 = vrot.slane %v474, 1
      %v482 = vsel %vm445, %v479, %v481
      %v486 = vadd.f32 %v460, %v480
      %v487 = vadd.f32 %v461, %v482
      %v488 = vadd.f32 %v462, %v481
      %v489 = vld [vmem:[%s433 + $0x2] sm:$0x1]
      %v490 = vlaneseq
      %v491 = vshrl.u32 %v490, 7
      %v492 = vsub.s32 0, %v491
      %v493 = vrot.slane %v489, %v492
      %495 = vrot.lane.b32.xlu0 %v493, 8
      %v496 = vpop.permute.xlu0 %495
      %v498 = vmul.f32 %v280, %v496
      %v499 = vmul.f32 %v281, %v496
      %v500 = vmul.f32 %v282, %v496
      %v504 = vrot.slane %v498, 1
      %v505 = vrot.slane %v499, 1
      %v506 = vsel %vm445, %v504, %v505
      %v507 = vrot.slane %v500, 1
      %v508 = vsel %vm445, %v505, %v507
      %509 = vrot.lane.b32.xlu0 %v506, 124
      %v510 = vpop.permute.xlu0 %509
      %511 = vrot.lane.b32.xlu0 %v508, 124
      %v512 = vpop.permute.xlu0 %511
      %513 = vrot.lane.b32.xlu0 %v507, 124
      %v514 = vpop.permute.xlu0 %513
      %v518 = vadd.f32 %v486, %v510
      %v519 = vadd.f32 %v487, %v512
      %v520 = vadd.f32 %v488, %v514
      %v521 = vpack.c.bf16 %v519, %v518
      %v522 = vpack.c.bf16 %v520, %v520
      %v523 = vld [vmem:[%s2] sm:$0xff]
      %v524 = vld [vmem:[%s2 + $0x8] sm:$0xff]
      %v525 = vld [vmem:[%s2 + $0x10] sm:$0xff]
      %v526 = vld [vmem:[%s2 + $0x18] sm:$0xff]
      %v527 = vld [vmem:[%s2 + $0x20] sm:$0xff]
      %v528 = vld [vmem:[%s2 + $0x28] sm:$0xff]
      %v529 = vld [vmem:[%s2 + $0x30] sm:$0xff]
      %v530 = vld [vmem:[%s2 + $0x38] sm:$0xff]
      %v531 = vld [vmem:[%s3] sm:$0x3]
      %v533 = vlaneseq
      %v534 = vshrl.u32 %v533, 7
      %v535 = vsub.s32 0, %v534
      %v536 = vrot.slane %v531, %v535
      %v537 = vlaneseq
      %v538 = vshrl.u32 %v537, 7
      %v539 = vsub.s32 1, %v538
      %v540 = vrot.slane %v531, %v539
      %vm543 = vsmask.f32 7424
      %v545 = vshrl.u32 %v521, 16
      %v547 = vshll.u32 %v521, 16
      %v549 = vrot.slane %v547, 1
      %v550 = vor.u32 %v545, %v549
      %v552 = vshll.u32 %v522, 16
      %v554 = vrot.slane %v552, 1
      %v555 = vsel %vm543, %v550, %v554
      %v556 = vshrl.u32 %v522, 16
      %v558 = vor.u32 %v556, %v554
      %559 = vrot.lane.b32.xlu0 %v555, 124
      %v560 = vpop.permute.xlu0 %559
      %561 = vrot.lane.b32.xlu0 %v558, 124
      %v562 = vpop.permute.xlu0 %561
      %v571 = vunpack.c.l.b16 %v523
      %v572 = vunpack.c.h.b16 %v523
      %v573 = vunpack.c.l.b16 %v524
      %v574 = vunpack.c.h.b16 %v524
      %v575 = vunpack.c.l.b16 %v525
      %v576 = vunpack.c.h.b16 %v525
      %v577 = vunpack.c.l.b16 %v526
      %v578 = vunpack.c.h.b16 %v526
      %v579 = vunpack.c.l.b16 %v527
      %v580 = vunpack.c.h.b16 %v527
      %v581 = vunpack.c.l.b16 %v528
      %v582 = vunpack.c.h.b16 %v528
      %v583 = vunpack.c.l.b16 %v529
      %v584 = vunpack.c.h.b16 %v529
      %v585 = vunpack.c.l.b16 %v530
      %v586 = vunpack.c.h.b16 %v530
      %v587 = vpack.c.b16 %v573, %v571
      %v588 = vpack.c.b16 %v574, %v572
      %v589 = vpack.c.b16 %v577, %v575
      %v590 = vpack.c.b16 %v578, %v576
      %v591 = vpack.c.b16 %v581, %v579
      %v592 = vpack.c.b16 %v582, %v580
      %v593 = vpack.c.b16 %v585, %v583
      %v594 = vpack.c.b16 %v586, %v584
      %vm603 = vcmask 523264
      %v605 = vsel %vm603, %v560, 0
      %v608 = vsel %vm603, %v562, 0
      %610 = vmatprep.subr.bf16.mxu0 0
      %611 = vmatpush1.bf16.msra.mxu0 0
      %612 = vmatprep.subr.bf16.mxu0 0
      %613 = vmatpush1.bf16.msra.mxu0 0
      %614 = vmatprep.subr.bf16.mxu0 0
      %615 = vmatpush1.bf16.msra.mxu0 0
      %616 = vmatprep.subr.bf16.mxu0 0
      %617 = vmatpush1.bf16.msra.mxu0 0
      %618 = vmatprep.subr.bf16.mxu0 %v594
      %619 = vmatpush1.bf16.msra.mxu0 %v593
      %620 = vmatprep.subr.bf16.mxu0 %v592
      %621 = vmatpush1.bf16.msra.mxu0 %v591
      %622 = vmatprep.subr.bf16.mxu0 %v590
      %623 = vmatpush1.bf16.msra.mxu0 %v589
      %624 = vmatprep.subr.bf16.mxu0 %v588
      %625 = vmatpush1.bf16.msra.mxu0 %v587
      %626 = vmatprep.subr.bf16.mxu0 0
      %627 = vmatpush2.bf16.msra.mxu0 0
      %628 = vmatprep.subr.bf16.mxu0 0
      %629 = vmatpush2.bf16.msra.mxu0 0
      %630 = vmatprep.subr.bf16.mxu0 0
      %631 = vmatpush2.bf16.msra.mxu0 0
      %632 = vmatprep.subr.bf16.mxu0 0
      %633 = vmatpush2.bf16.msra.mxu0 0
      %634 = vmatprep.subr.bf16.mxu0 0
      %635 = vmatpush2.bf16.msra.mxu0 0
      %636 = vmatprep.subr.bf16.mxu0 0
      %637 = vmatpush2.bf16.msra.mxu0 0
      %638 = vmatprep.subr.bf16.mxu0 0
      %639 = vmatpush2.bf16.msra.mxu0 0
      %640 = vmatprep.subr.bf16.mxu0 0
      %641 = vmatpush2.bf16.msra.mxu0 0
      %642 = vmatprep.mubr.bf16.mxu0 0
      %643 = vmatmul.mubr.bf16.gmra.mxu0 %v605
      %v644 = vpop.f32.mrf.mxu0
      %v645 = vadd.f32 %v536, %v644
      %v646 = vpop.f32.mrf.mxu0
      %v647 = vadd.f32 %v540, %v646
      %v648 = vpop.f32.mrf.mxu0
      %v649 = vadd.f32 %v536, %v648
      %v650 = vpop.f32.mrf.mxu0
      %v651 = vadd.f32 %v540, %v650
      %652 = vmatprep.mubr.bf16.mxu0 0
      %653 = vmatmul.mubr.bf16.gmra.mxu0 %v608
      %v654 = vpop.f32.mrf.mxu0
      %v655 = vadd.f32 %v536, %v654
      %v656 = vpop.f32.mrf.mxu0
      %v657 = vadd.f32 %v540, %v656
      %v658 = vpop.f32.mrf.mxu0
      %v659 = vpop.f32.mrf.mxu0
      %660 = vdwg.mxu0
      %v661 = vmax.f32 %v645, 0.0
      %v662 = vmax.f32 %v647, 0.0
      %v663 = vmax.f32 %v649, 0.0
      %v664 = vmax.f32 %v651, 0.0
      %v665 = vmax.f32 %v655, 0.0
      %v666 = vmax.f32 %v657, 0.0
      %v667 = vlaneseq
      %v668 = vshrl.u32 %v667, 7
      %v669 = vadd.s32 %v668, 8
      %v670 = vadd.s32 %v668, 16
      %vm671 = vcmp.ge.s32.totalorder %v668, 1
      %vm672 = vcmp.ge.s32.totalorder %v669, 1
      %vm673 = vcmp.ge.s32.totalorder %v670, 1
      %vm674 = vcmp.le.s32.totalorder %v668, 16
      %vm675 = vcmp.le.s32.totalorder %v669, 16
      %vm676 = vcmp.le.s32.totalorder %v670, 16
      %vm677 = vmand %vm671, %vm674
      %vm678 = vmand %vm672, %vm675
      %vm679 = vmand %vm673, %vm676
      %v680 = vsel %vm677, 1, 0
      %v681 = vsel %vm678, 1, 0
      %v682 = vsel %vm679, 1, 0
      %vm683 = vcmp.eq.s32.totalorder %v680, 1
      %vm684 = vcmp.eq.s32.totalorder %v681, 1
      %vm685 = vcmp.eq.s32.totalorder %v682, 1
      %v686 = vsel %vm683, %v661, 0.0
      %v687 = vsel %vm683, %v662, 0.0
      %v688 = vsel %vm684, %v663, 0.0
      %v689 = vsel %vm684, %v664, 0.0
      %v690 = vsel %vm685, %v665, 0.0
      %v691 = vsel %vm685, %v666, 0.0
      %s692 = scalar_lea.vmem %s4, 4
      %v693 = vld [vmem:[%s692 + $0x1] sm:$0x1]
      %v694 = vlaneseq
      %v695 = vshrl.u32 %v694, 7
      %v696 = vsub.s32 0, %v695
      %v697 = vrot.slane %v693, %v696
      %699 = vrot.lane.b32.xlu0 %v697, 8
      %v700 = vpop.permute.xlu0 %699
      %v702 = vmul.f32 %v686, %v700
      %v703 = vmul.f32 %v687, %v700
      %v704 = vmul.f32 %v688, %v700
      %v705 = vmul.f32 %v689, %v700
      %v706 = vmul.f32 %v690, %v700
      %v707 = vmul.f32 %v691, %v700
      %v708 = vld [vmem:[%s4] sm:$0x1]
      %v709 = vlaneseq
      %v710 = vshrl.u32 %v709, 7
      %v711 = vsub.s32 0, %v710
      %v712 = vrot.slane %v708, %v711
      %v713 = vmul.f32 %v686, %v712
      %v714 = vmul.f32 %v688, %v712
      %v717 = vrot.slane %v713, 7
      %v718 = vrot.slane %v714, 7
      %v719 = vsel %vm307, %v717, %v718
      %720 = vrot.lane.b32.xlu0 %v717, 8
      %v721 = vpop.permute.xlu0 %720
      %722 = vrot.lane.b32.xlu0 %v719, 8
      %v723 = vpop.permute.xlu0 %722
      %724 = vrot.lane.b32.xlu0 %v718, 8
      %v725 = vpop.permute.xlu0 %724
      %v729 = vadd.f32 %v702, %v721
      %v730 = vadd.f32 %v703, %v721
      %v731 = vadd.f32 %v704, %v723
      %v732 = vadd.f32 %v705, %v723
      %v733 = vadd.f32 %v706, %v725
      %v734 = vadd.f32 %v707, %v725
      %v735 = vld [vmem:[%s4 + $0x1] sm:$0x1]
      %v736 = vlaneseq
      %v737 = vshrl.u32 %v736, 7
      %v738 = vsub.s32 0, %v737
      %v739 = vrot.slane %v735, %v738
      %741 = vrot.lane.b32.xlu0 %v739, 8
      %v742 = vpop.permute.xlu0 %741
      %v744 = vmul.f32 %v686, %v742
      %v745 = vmul.f32 %v687, %v742
      %v746 = vmul.f32 %v688, %v742
      %v747 = vmul.f32 %v689, %v742
      %v752 = vrot.slane %v744, 7
      %v753 = vrot.slane %v745, 7
      %v754 = vrot.slane %v746, 7
      %v755 = vsel %vm307, %v752, %v754
      %v756 = vrot.slane %v747, 7
      %v757 = vsel %vm307, %v753, %v756
      %v764 = vadd.f32 %v729, %v752
      %v765 = vadd.f32 %v730, %v753
      %v766 = vadd.f32 %v731, %v755
      %v767 = vadd.f32 %v732, %v757
      %v768 = vadd.f32 %v733, %v754
      %v769 = vadd.f32 %v734, %v756
      %v770 = vld [vmem:[%s4 + $0x2] sm:$0x1]
      %v771 = vlaneseq
      %v772 = vshrl.u32 %v771, 7
      %v773 = vsub.s32 0, %v772
      %v774 = vrot.slane %v770, %v773
      %776 = vrot.lane.b32.xlu0 %v774, 16
      %v777 = vpop.permute.xlu0 %776
      %v779 = vmul.f32 %v686, %v777
      %v780 = vmul.f32 %v687, %v777
      %v781 = vmul.f32 %v688, %v777
      %v782 = vmul.f32 %v689, %v777
      %v787 = vrot.slane %v779, 7
      %v788 = vrot.slane %v780, 7
      %v789 = vrot.slane %v781, 7
      %v790 = vsel %vm307, %v787, %v789
      %v791 = vrot.slane %v782, 7
      %v792 = vsel %vm307, %v788, %v791
      %793 = vrot.lane.b32.xlu0 %v787, 120
      %v794 = vpop.permute.xlu0 %793
      %795 = vrot.lane.b32.xlu0 %v788, 120
      %v796 = vpop.permute.xlu0 %795
      %797 = vrot.lane.b32.xlu0 %v790, 120
      %v798 = vpop.permute.xlu0 %797
      %799 = vrot.lane.b32.xlu0 %v792, 120
      %v800 = vpop.permute.xlu0 %799
      %801 = vrot.lane.b32.xlu0 %v789, 120
      %v802 = vpop.permute.xlu0 %801
      %803 = vrot.lane.b32.xlu0 %v791, 120
      %v804 = vpop.permute.xlu0 %803
      %vm805 = vcmask 982016
      %v806 = vsel %vm805, %v794, %v796
      %v807 = vsel %vm805, %v798, %v800
      %v808 = vsel %vm805, %v802, %v804
      %v815 = vadd.f32 %v764, %v806
      %v816 = vadd.f32 %v765, %v796
      %v817 = vadd.f32 %v766, %v807
      %v818 = vadd.f32 %v767, %v800
      %v819 = vadd.f32 %v768, %v808
      %v820 = vadd.f32 %v769, %v804
      %v821 = vld [vmem:[%s692] sm:$0x1]
      %v822 = vlaneseq
      %v823 = vshrl.u32 %v822, 7
      %v824 = vsub.s32 0, %v823
      %v825 = vrot.slane %v821, %v824
      %v826 = vmul.f32 %v686, %v825
      %v827 = vmul.f32 %v688, %v825
      %v828 = vmul.f32 %v690, %v825
      %832 = vrot.lane.b32.xlu0 %v826, 8
      %v833 = vpop.permute.xlu0 %832
      %834 = vrot.lane.b32.xlu0 %v827, 8
      %v835 = vpop.permute.xlu0 %834
      %836 = vrot.lane.b32.xlu0 %v828, 8
      %v837 = vpop.permute.xlu0 %836
      %v841 = vadd.f32 %v815, %v833
      %v842 = vadd.f32 %v816, %v833
      %v843 = vadd.f32 %v817, %v835
      %v844 = vadd.f32 %v818, %v835
      %v845 = vadd.f32 %v819, %v837
      %v846 = vadd.f32 %v820, %v837
      %v847 = vld [vmem:[%s692 + $0x2] sm:$0x1]
      %v848 = vlaneseq
      %v849 = vshrl.u32 %v848, 7
      %v850 = vsub.s32 0, %v849
      %v851 = vrot.slane %v847, %v850
      %853 = vrot.lane.b32.xlu0 %v851, 16
      %v854 = vpop.permute.xlu0 %853
      %v856 = vmul.f32 %v686, %v854
      %v857 = vmul.f32 %v687, %v854
      %v858 = vmul.f32 %v688, %v854
      %v859 = vmul.f32 %v689, %v854
      %v860 = vmul.f32 %v690, %v854
      %v861 = vmul.f32 %v691, %v854
      %868 = vrot.lane.b32.xlu0 %v856, 120
      %v869 = vpop.permute.xlu0 %868
      %870 = vrot.lane.b32.xlu0 %v857, 120
      %v871 = vpop.permute.xlu0 %870
      %872 = vrot.lane.b32.xlu0 %v858, 120
      %v873 = vpop.permute.xlu0 %872
      %874 = vrot.lane.b32.xlu0 %v859, 120
      %v875 = vpop.permute.xlu0 %874
      %876 = vrot.lane.b32.xlu0 %v860, 120
      %v877 = vpop.permute.xlu0 %876
      %878 = vrot.lane.b32.xlu0 %v861, 120
      %v879 = vpop.permute.xlu0 %878
      %v880 = vsel %vm805, %v869, %v871
      %v881 = vsel %vm805, %v873, %v875
      %v882 = vsel %vm805, %v877, %v879
      %v889 = vadd.f32 %v841, %v880
      %v890 = vadd.f32 %v842, %v871
      %v891 = vadd.f32 %v843, %v881
      %v892 = vadd.f32 %v844, %v875
      %v893 = vadd.f32 %v845, %v882
      %v894 = vadd.f32 %v846, %v879
      %s895 = scalar_lea.vmem %s4, 8
      %v896 = vld [vmem:[%s895] sm:$0x1]
      %v897 = vlaneseq
      %v898 = vshrl.u32 %v897, 7
      %v899 = vsub.s32 0, %v898
      %v900 = vrot.slane %v896, %v899
      %v901 = vmul.f32 %v686, %v900
      %v902 = vmul.f32 %v688, %v900
      %v903 = vmul.f32 %v690, %v900
      %v907 = vrot.slane %v901, 1
      %v908 = vrot.slane %v902, 1
      %v909 = vsel %vm445, %v907, %v908
      %v910 = vrot.slane %v903, 1
      %v911 = vsel %vm445, %v908, %v910
      %912 = vrot.lane.b32.xlu0 %v909, 8
      %v913 = vpop.permute.xlu0 %912
      %914 = vrot.lane.b32.xlu0 %v911, 8
      %v915 = vpop.permute.xlu0 %914
      %916 = vrot.lane.b32.xlu0 %v910, 8
      %v917 = vpop.permute.xlu0 %916
      %v921 = vadd.f32 %v889, %v913
      %v922 = vadd.f32 %v890, %v913
      %v923 = vadd.f32 %v891, %v915
      %v924 = vadd.f32 %v892, %v915
      %v925 = vadd.f32 %v893, %v917
      %v926 = vadd.f32 %v894, %v917
      %v927 = vld [vmem:[%s895 + $0x1] sm:$0x1]
      %v928 = vlaneseq
      %v929 = vshrl.u32 %v928, 7
      %v930 = vsub.s32 0, %v929
      %v931 = vrot.slane %v927, %v930
      %933 = vrot.lane.b32.xlu0 %v931, 8
      %v934 = vpop.permute.xlu0 %933
      %v936 = vmul.f32 %v686, %v934
      %v937 = vmul.f32 %v687, %v934
      %v938 = vmul.f32 %v688, %v934
      %v939 = vmul.f32 %v689, %v934
      %v940 = vmul.f32 %v690, %v934
      %v941 = vmul.f32 %v691, %v934
      %v948 = vrot.slane %v936, 1
      %v949 = vrot.slane %v938, 1
      %v950 = vsel %vm445, %v948, %v949
      %v951 = vrot.slane %v937, 1
      %v952 = vrot.slane %v939, 1
      %v953 = vsel %vm445, %v951, %v952
      %v954 = vrot.slane %v940, 1
      %v955 = vsel %vm445, %v949, %v954
      %v956 = vrot.slane %v941, 1
      %v957 = vsel %vm445, %v952, %v956
      %v964 = vadd.f32 %v921, %v950
      %v965 = vadd.f32 %v922, %v953
      %v966 = vadd.f32 %v923, %v955
      %v967 = vadd.f32 %v924, %v957
      %v968 = vadd.f32 %v925, %v954
      %v969 = vadd.f32 %v926, %v956
      %v970 = vld [vmem:[%s895 + $0x2] sm:$0x1]
      %v971 = vlaneseq
      %v972 = vshrl.u32 %v971, 7
      %v973 = vsub.s32 0, %v972
      %v974 = vrot.slane %v970, %v973
      %976 = vrot.lane.b32.xlu0 %v974, 16
      %v977 = vpop.permute.xlu0 %976
      %v979 = vmul.f32 %v686, %v977
      %v980 = vmul.f32 %v687, %v977
      %v981 = vmul.f32 %v688, %v977
      %v982 = vmul.f32 %v689, %v977
      %v983 = vmul.f32 %v690, %v977
      %v984 = vmul.f32 %v691, %v977
      %v991 = vrot.slane %v979, 1
      %v992 = vrot.slane %v981, 1
      %v993 = vsel %vm445, %v991, %v992
      %v994 = vrot.slane %v980, 1
      %v995 = vrot.slane %v982, 1
      %v996 = vsel %vm445, %v994, %v995
      %v997 = vrot.slane %v983, 1
      %v998 = vsel %vm445, %v992, %v997
      %v999 = vrot.slane %v984, 1
      %v1000 = vsel %vm445, %v995, %v999
      %1001 = vrot.lane.b32.xlu0 %v993, 120
      %v1002 = vpop.permute.xlu0 %1001
      %1003 = vrot.lane.b32.xlu0 %v996, 120
      %v1004 = vpop.permute.xlu0 %1003
      %1005 = vrot.lane.b32.xlu0 %v998, 120
      %v1006 = vpop.permute.xlu0 %1005
      %1007 = vrot.lane.b32.xlu0 %v1000, 120
      %v1008 = vpop.permute.xlu0 %1007
      %1009 = vrot.lane.b32.xlu0 %v997, 120
      %v1010 = vpop.permute.xlu0 %1009
      %1011 = vrot.lane.b32.xlu0 %v999, 120
      %v1012 = vpop.permute.xlu0 %1011
      %v1013 = vsel %vm805, %v1002, %v1004
      %v1014 = vsel %vm805, %v1006, %v1008
      %v1015 = vsel %vm805, %v1010, %v1012
      %v1022 = vadd.f32 %v964, %v1013
      %v1023 = vadd.f32 %v965, %v1004
      %v1024 = vadd.f32 %v966, %v1014
      %v1025 = vadd.f32 %v967, %v1008
      %v1026 = vadd.f32 %v968, %v1015
      %v1027 = vadd.f32 %v969, %v1012
      %v1028 = vpack.c.bf16 %v1024, %v1022
      %v1029 = vpack.c.bf16 %v1025, %v1023
      %v1030 = vpack.c.bf16 %v1026, %v1026
      %v1031 = vpack.c.bf16 %v1027, %v1027
      %v1032 = vld [vmem:[%s5] sm:$0xf]
      %v1033 = vld [vmem:[%s5 + $0x4] sm:$0xf]
      %v1034 = vld [vmem:[%s5 + $0x8] sm:$0xf]
      %v1035 = vld [vmem:[%s5 + $0xc] sm:$0xf]
      %v1036 = vld [vmem:[%s5 + $0x10] sm:$0xf]
      %v1037 = vld [vmem:[%s5 + $0x14] sm:$0xf]
      %v1038 = vld [vmem:[%s5 + $0x18] sm:$0xf]
      %v1039 = vld [vmem:[%s5 + $0x1c] sm:$0xf]
      %v1040 = vld [vmem:[%s5 + $0x20] sm:$0xf]
      %v1041 = vld [vmem:[%s5 + $0x24] sm:$0xf]
      %v1042 = vld [vmem:[%s5 + $0x28] sm:$0xf]
      %v1043 = vld [vmem:[%s5 + $0x2c] sm:$0xf]
      %v1044 = vld [vmem:[%s5 + $0x30] sm:$0xf]
      %v1045 = vld [vmem:[%s5 + $0x34] sm:$0xf]
      %v1046 = vld [vmem:[%s5 + $0x38] sm:$0xf]
      %v1047 = vld [vmem:[%s5 + $0x3c] sm:$0xf]
      %v1048 = vld [vmem:[%s6] sm:$0x1]
      %v1050 = vlaneseq
      %v1051 = vshrl.u32 %v1050, 7
      %v1052 = vsub.s32 0, %v1051
      %v1053 = vrot.slane %v1048, %v1052
      %v1056 = vshrl.u32 %v1028, 16
      %v1058 = vshll.u32 %v1028, 16
      %v1060 = vrot.slane %v1058, 1
      %v1061 = vor.u32 %v1056, %v1060
      %v1063 = vshll.u32 %v1030, 16
      %v1065 = vrot.slane %v1063, 1
      %v1066 = vsel %vm543, %v1061, %v1065
      %v1068 = vshrl.u32 %v1029, 16
      %v1070 = vshll.u32 %v1029, 16
      %v1072 = vrot.slane %v1070, 1
      %v1073 = vor.u32 %v1068, %v1072
      %v1075 = vshll.u32 %v1031, 16
      %v1077 = vrot.slane %v1075, 1
      %v1078 = vsel %vm543, %v1073, %v1077
      %1079 = vrot.lane.b32.xlu0 %v1066, 120
      %v1080 = vpop.permute.xlu0 %1079
      %1081 = vrot.lane.b32.xlu0 %v1078, 120
      %v1082 = vpop.permute.xlu0 %1081
      %vm1083 = vcmask 982016
      %v1084 = vsel %vm1083, %v1080, %v1082
      %v1102 = vunpack.c.l.b16 %v1032
      %v1103 = vunpack.c.l.b16 %v1033
      %v1104 = vunpack.c.l.b16 %v1034
      %v1105 = vunpack.c.l.b16 %v1035
      %v1106 = vunpack.c.l.b16 %v1036
      %v1107 = vunpack.c.l.b16 %v1037
      %v1108 = vunpack.c.l.b16 %v1038
      %v1109 = vunpack.c.l.b16 %v1039
      %v1110 = vunpack.c.l.b16 %v1040
      %v1111 = vunpack.c.l.b16 %v1041
      %v1112 = vunpack.c.l.b16 %v1042
      %v1113 = vunpack.c.l.b16 %v1043
      %v1114 = vunpack.c.l.b16 %v1044
      %v1115 = vunpack.c.l.b16 %v1045
      %v1116 = vunpack.c.l.b16 %v1046
      %v1117 = vunpack.c.l.b16 %v1047
      %v1118 = vpack.c.b16 %v1103, %v1102
      %v1119 = vpack.c.b16 %v1105, %v1104
      %v1120 = vpack.c.b16 %v1107, %v1106
      %v1121 = vpack.c.b16 %v1109, %v1108
      %v1122 = vpack.c.b16 %v1111, %v1110
      %v1123 = vpack.c.b16 %v1113, %v1112
      %v1124 = vpack.c.b16 %v1115, %v1114
      %v1125 = vpack.c.b16 %v1117, %v1116
      %1134 = vmatprep.subr.bf16.mxu0 0
      %1135 = vmatpush1.bf16.msra.mxu0 %v1125
      %1136 = vmatprep.subr.bf16.mxu0 0
      %1137 = vmatpush1.bf16.msra.mxu0 %v1124
      %1138 = vmatprep.subr.bf16.mxu0 0
      %1139 = vmatpush1.bf16.msra.mxu0 %v1123
      %1140 = vmatprep.subr.bf16.mxu0 0
      %1141 = vmatpush1.bf16.msra.mxu0 %v1122
      %1142 = vmatprep.subr.bf16.mxu0 0
      %1143 = vmatpush1.bf16.msra.mxu0 %v1121
      %1144 = vmatprep.subr.bf16.mxu0 0
      %1145 = vmatpush1.bf16.msra.mxu0 %v1120
      %1146 = vmatprep.subr.bf16.mxu0 0
      %1147 = vmatpush1.bf16.msra.mxu0 %v1119
      %1148 = vmatprep.subr.bf16.mxu0 0
      %1149 = vmatpush1.bf16.msra.mxu0 %v1118
      %1150 = vmatprep.subr.bf16.mxu0 0
      %1151 = vmatpush2.bf16.msra.mxu0 0
      %1152 = vmatprep.subr.bf16.mxu0 0
      %1153 = vmatpush2.bf16.msra.mxu0 0
      %1154 = vmatprep.subr.bf16.mxu0 0
      %1155 = vmatpush2.bf16.msra.mxu0 0
      %1156 = vmatprep.subr.bf16.mxu0 0
      %1157 = vmatpush2.bf16.msra.mxu0 0
      %1158 = vmatprep.subr.bf16.mxu0 0
      %1159 = vmatpush2.bf16.msra.mxu0 0
      %1160 = vmatprep.subr.bf16.mxu0 0
      %1161 = vmatpush2.bf16.msra.mxu0 0
      %1162 = vmatprep.subr.bf16.mxu0 0
      %1163 = vmatpush2.bf16.msra.mxu0 0
      %1164 = vmatprep.subr.bf16.mxu0 0
      %1165 = vmatpush2.bf16.msra.mxu0 0
      %1166 = vmatprep.mubr.bf16.mxu0 0
      %1167 = vmatmul.mubr.bf16.gmra.mxu0 %v1084
      %v1168 = vpop.f32.mrf.mxu0
      %v1169 = vadd.f32 %v1053, %v1168
      %v1170 = vpop.f32.mrf.mxu0
      %v1171 = vpop.f32.mrf.mxu0
      %v1172 = vadd.f32 %v1053, %v1171
      %v1173 = vpop.f32.mrf.mxu0
      %1174 = vdwg.mxu0
      %v1175 = vmax.f32 %v1169, 0.0
      %v1176 = vmax.f32 %v1172, 0.0
      %1177 = vst [vmem:[%s278] sm:$0xff] %v1175
      %1178 = vst [vmem:[%s278 + $0x8] sm:$0xff] %v1176
      %p1179 = scmp.lt.s32.totalorder %s18, 1
      %s1180 = scalar_select %p1179, %s18, 1
      %s1181 = smul.addr %s1180, 2
      %s1182 = smul.addr %s1181, 8
      %s1183 = scalar_lea.vmem %s7, %s1182
      // Predicated region
      $region49: #{double_conv_forward.1} parent=47 // pred_check
        %p1184 = pneg %p188
      $region50: #{double_conv_forward.1} parent=47 // pred_check_branch
        %1186 = sbr.rel (%p1184) target = $region52
      $region51: #{double_conv_forward.1} parent=47 // pred_region
        _
      $region52: #{double_conv_forward.1} parent=47 // pred_fallthru
        _
    $region48: #{double_conv_forward.1} parent=5 // pred_fallthru
      _
    %p1187 = scmp.le.s32.totalorder 2, %s13
    // Predicated region
    $region53: #{double_conv_forward.1} parent=5 // pred_check
      %p1188 = pneg %p1187
    $region54: #{double_conv_forward.1} parent=5 // pred_check_branch
      %1190 = sbr.rel (%p1188) target = $region56
    $region55: #{double_conv_forward.1} parent=5 // pred_region
      %s1191 = ssub.s32 %s13, 2
      // Predicated region
      $region57: #{double_conv_forward.1} parent=55 // pred_check
        %p1192 = pneg %p194
      $region58: #{double_conv_forward.1} parent=55 // pred_check_branch
        %1194 = sbr.rel (%p1192) target = $region60
      $region59: #{double_conv_forward.1} parent=55 // pred_region
        %p1195 = scmp.lt.s32.totalorder %s19, 1
        %s1196 = scalar_select %p1195, %s19, 1
        %s1197 = smul.addr %s1196, 2
        %s1198 = smul.addr %s1197, 8
        %s1199 = scalar_lea.vmem %s7, %s1198
      $region60: #{double_conv_forward.1} parent=55 // pred_fallthru
        _
    $region56: #{double_conv_forward.1} parent=5 // pred_fallthru
      _
  $region6: #{double_conv_forward.1} parent=0 // loop_footer
    %s17 = sadd.s32 1, %s13
  $region7: #{double_conv_forward.1} parent=0 // loop_footer_branch
    %12 = sbr.rel target = $region3
  $region8: #{double_conv_forward.1} parent=0 // loop_exit
    _

</llo_original>
